<compile_context>
chip_gen: v7x
topology: tpu7x:2x2x1
jax: 0.10.0
libtpu: 0.0.40
codegen_flags: <defaults>
</compile_context>

<pallas_src>
import math

import numpy as np
import jax
import jax.numpy as jnp
from jax import lax
from jax.experimental import pallas as pl
from jax.experimental.pallas import tpu as pltpu


def _periodic_laplacian_matrix(n: int, h: float) -> np.ndarray:
    """Dense 1-D periodic second-difference operator (n x n) / h^2."""
    m = -2.0 * np.eye(n) + np.eye(n, k=1) + np.eye(n, k=-1)
    m[0, -1] += 1.0
    m[-1, 0] += 1.0
    return (m / (h * h)).astype(np.float64)


def _projection_operators(nx, ny, dx, dy):
    """Fast-diagonalization operators for the periodic pressure solve (host-side setup,
    the analogue of torch_cfd's PressureProjection construction)."""
    lam_x, vx = np.linalg.eigh(_periodic_laplacian_matrix(nx, dx))
    lam_y, vy = np.linalg.eigh(_periodic_laplacian_matrix(ny, dy))
    eig_sum = lam_x[:, None] + lam_y[None, :]
    cutoff = 1e-8 * np.max(np.abs(eig_sum))
    with np.errstate(divide="ignore"):
        inv_eig = np.where(np.abs(eig_sum) > cutoff, 1.0 / eig_sum, 0.0)
    to32 = lambda a: jnp.asarray(np.ascontiguousarray(a), jnp.float32)
    # (Vx^T, Vx, Vy, Vy^T, pseudo-inverse of eigenvalue sums) -- transposes done on host
    return to32(vx.T), to32(vx), to32(vy), to32(vy.T), to32(inv_eig)


def make_ns_step_kernel(dt: float, dx: float, dy: float, nu: float, n_steps: int):
    """Builds the Pallas kernel for n_steps of forward-Euler + projection NSE stepping."""
    inv_dx = 1.0 / dx
    inv_dy = 1.0 / dy
    inv_dx2 = inv_dx * inv_dx
    inv_dy2 = inv_dy * inv_dy
    dt_over_dx = dt * inv_dx
    dt_over_dy = dt * inv_dy

    def kernel(u_ref, v_ref, vxt_ref, vx_ref, vy_ref, vyt_ref, inv_eig_ref,
               u_out_ref, v_out_ref):
        # loop-invariant spectral operators: loaded into registers/VMEM once
        vxt = vxt_ref[...]
        vx = vx_ref[...]
        vy = vy_ref[...]
        vyt = vyt_ref[...]
        inv_eig = inv_eig_ref[...]

        def proll(x, shift, axis):
            # periodic shift on the XLU rotate slot; shift normalized to a positive amount,
            # semantics identical to jnp.roll
            return pltpu.roll(x, shift % x.shape[axis], axis)

        def tvd_lax_wendroff(c, c_right, c_left, c_next, w, dt_over_h):
            """interpolation.apply_tvd_limiter(lax_wendroff, van_leer_limiter), fused:
            phi = van_leer(num/diff) = 2*num/(num+diff) when num/diff > 0 else 0."""
            pos_w = w > 0
            diff = c_right - c
            courant = dt_over_h * w
            c_low = jnp.where(pos_w, c, c_right)                      # upwind
            c_high = jnp.where(pos_w,                                 # Lax-Wendroff
                               c + 0.5 * (1.0 - courant) * diff,
                               c_right - 0.5 * (1.0 + courant) * diff)
            num = jnp.where(pos_w, c - c_left, c_next - c_right)
            phi = jnp.where(num * diff > 0,
                            2.0 * num * pl.reciprocal(num + diff, approx=True),
                            jnp.zeros_like(num))
            return c_low + phi * (c_high - c_low)

        def explicit_component(c, c_xp, c_xm, c_xpp, c_yp, c_ym, c_ypp, w_x, w_y):
            """-div(flux) + nu * laplacian(c), flux divergence accumulated axis-by-axis."""
            cx = tvd_lax_wendroff(c, c_xp, c_xm, c_xpp, w_x, dt_over_dx)
            fx = cx * w_x
            adv = (fx - proll(fx, 1, 0)) * inv_dx
            cy = tvd_lax_wendroff(c, c_yp, c_ym, c_ypp, w_y, dt_over_dy)
            fy = cy * w_y
            adv = adv + (fy - proll(fy, 1, 1)) * inv_dy
            lap = ((c_xp + c_xm - 2.0 * c) * inv_dx2
                   + (c_yp + c_ym - 2.0 * c) * inv_dy2)
            return nu * lap - adv

        def step(carry):
            u, v = carry
            # hoisted periodic shifts, shared by face interpolation, TVD and laplacian
            u_xp = proll(u, -1, 0); u_xm = proll(u, 1, 0); u_xpp = proll(u_xp, -1, 0)
            u_yp = proll(u, -1, 1); u_ym = proll(u, 1, 1); u_ypp = proll(u_yp, -1, 1)
            v_xp = proll(v, -1, 0); v_xm = proll(v, 1, 0); v_xpp = proll(v_xp, -1, 0)
            v_yp = proll(v, -1, 1); v_ym = proll(v, 1, 1); v_ypp = proll(v_yp, -1, 1)

            # linear interpolation of velocities onto the control-volume faces
            wu_x = 0.5 * (u + u_xp)   # for c=u (offset (1,.5)): face (1.5,.5)
            wu_y = 0.5 * (v + v_xp)   #                          face (1, 1)
            wv_x = 0.5 * (u + u_yp)   # for c=v (offset (.5,1)): face (1, 1)
            wv_y = 0.5 * (v + v_yp)   #                          face (.5,1.5)

            # explicit terms: convection + diffusion (drag=0, forcing=None)
            du_dt = explicit_component(u, u_xp, u_xm, u_xpp, u_yp, u_ym, u_ypp, wu_x, wu_y)
            dv_dt = explicit_component(v, v_xp, v_xm, v_xpp, v_yp, v_ym, v_ypp, wv_x, wv_y)

            # forward_euler RK stage: u* = u0 + dt * k0
            u_star = u + dt * du_dt
            v_star = v + dt * dv_dt

            # pressure projection: L q = div(u*), subtract forward-difference grad q
            div = ((u_star - proll(u_star, 1, 0)) * inv_dx
                   + (v_star - proll(v_star, 1, 1)) * inv_dy)
            q_hat = jnp.dot(jnp.dot(vxt, div, preferred_element_type=jnp.float32),
                            vy, preferred_element_type=jnp.float32) * inv_eig
            q = jnp.dot(jnp.dot(vx, q_hat, preferred_element_type=jnp.float32),
                        vyt, preferred_element_type=jnp.float32)

            u_new = u_star - (proll(q, -1, 0) - q) * inv_dx
            v_new = v_star - (proll(q, -1, 1) - q) * inv_dy
            return u_new, v_new

        u0 = u_ref[...]
        v0 = v_ref[...]
        if n_steps == 1:
            u_fin, v_fin = step((u0, v0))
        else:
            # fused rollout: state stays resident, operators DMA'd once per pallas_call
            u_fin, v_fin = lax.fori_loop(0, n_steps, lambda _, c: step(c), (u0, v0))
        u_out_ref[...] = u_fin
        v_out_ref[...] = v_fin

    return kernel


def navier_stokes_fvm_step(u, v, *, dt, dx, dy, viscosity, density=1.0, n_steps=1):
    """n_steps (default 1 == one module forward) of NavierStokes2DFVMProjection.forward."""
    nx, ny = u.shape
    nu = float(viscosity) / float(density)

    vxt, vx, vy, vyt, inv_eig = _projection_operators(nx, ny, dx, dy)
    kernel = make_ns_step_kernel(float(dt), float(dx), float(dy), nu, int(n_steps))

    def full_block(shape):
        return pl.BlockSpec(shape, lambda i: (0,) * len(shape))

    out_shape = (jax.ShapeDtypeStruct((nx, ny), jnp.float32),
                 jax.ShapeDtypeStruct((nx, ny), jnp.float32))

    return pl.pallas_call(
        kernel,
        grid=(1,),
        in_specs=[full_block((nx, ny)),   # u
                  full_block((nx, ny)),   # v
                  full_block((nx, nx)),   # Vx^T
                  full_block((nx, nx)),   # Vx
                  full_block((ny, ny)),   # Vy
                  full_block((ny, ny)),   # Vy^T
                  full_block((nx, ny))],  # inverse eigenvalue sums
        out_specs=(full_block((nx, ny)), full_block((nx, ny))),
        out_shape=out_shape,
        compiler_params=pltpu.CompilerParams(
            dimension_semantics=("arbitrary",)),
    )(u.astype(jnp.float32), v.astype(jnp.float32), vxt, vx, vy, vyt, inv_eig)


def _reference_step(u, v, vxt, vx, vy, vyt, inv_eig, dt, dx, dy, nu):
    """Plain-JAX reference of the same forward-Euler + projection step (for validation)."""
    hi = lax.Precision.HIGHEST
    roll = jnp.roll

    def tvd(c, w, axis, h):
        c_r = roll(c, -1, axis); c_l = roll(c, 1, axis); c_n = roll(c, -2, axis)
        pos = w > 0
        diff = c_r - c
        courant = (dt / h) * w
        c_low = jnp.where(pos, c, c_r)
        c_high = jnp.where(pos, c + 0.5 * (1.0 - courant) * diff,
                           c_r - 0.5 * (1.0 + courant) * diff)
        num = jnp.where(pos, c - c_l, c_n - c_r)
        phi = jnp.where(num * diff > 0, 2.0 * num / (num + diff), jnp.zeros_like(num))
        return c_low + phi * (c_high - c_low)

    def explicit(c, wx, wy):
        fx = tvd(c, wx, 0, dx) * wx
        fy = tvd(c, wy, 1, dy) * wy
        adv = (fx - roll(fx, 1, 0)) / dx + (fy - roll(fy, 1, 1)) / dy
        lap = ((roll(c, -1, 0) + roll(c, 1, 0) - 2.0 * c) / dx ** 2
               + (roll(c, -1, 1) + roll(c, 1, 1) - 2.0 * c) / dy ** 2)
        return nu * lap - adv

    wu_x = 0.5 * (u + roll(u, -1, 0)); wu_y = 0.5 * (v + roll(v, -1, 0))
    wv_x = 0.5 * (u + roll(u, -1, 1)); wv_y = 0.5 * (v + roll(v, -1, 1))
    us = u + dt * explicit(u, wu_x, wu_y)
    vs = v + dt * explicit(v, wv_x, wv_y)
    div = (us - roll(us, 1, 0)) / dx + (vs - roll(vs, 1, 1)) / dy
    q_hat = jnp.dot(jnp.dot(vxt, div, precision=hi), vy, precision=hi) * inv_eig
    q = jnp.dot(jnp.dot(vx, q_hat, precision=hi), vyt, precision=hi)
    un = us - (roll(q, -1, 0) - q) / dx
    vn = vs - (roll(q, -1, 1) - q) / dy
    return un, vn


if __name__ == "__main__":
    # small deterministic example: single-sample staggered velocity components (nx, ny)
    nx, ny = 64, 128
    dx = 2.0 * math.pi / nx
    dy = 2.0 * math.pi / ny
    viscosity, density, dt = 1e-3, 1.0, 1e-3
    nu = viscosity / density

    key = jax.random.PRNGKey(0)
    ku, kv = jax.random.split(key)
    u0 = 0.1 * jax.random.normal(ku, (nx, ny), dtype=jnp.float32)
    v0 = 0.1 * jax.random.normal(kv, (nx, ny), dtype=jnp.float32)

    u1, v1 = navier_stokes_fvm_step(u0, v0, dt=dt, dx=dx, dy=dy,
                                    viscosity=viscosity, density=density, n_steps=1)
    jax.block_until_ready((u1, v1))

    # validate against a plain-JAX implementation of the same forward step
    vxt, vx, vy, vyt, inv_eig = _projection_operators(nx, ny, dx, dy)
    u_ref, v_ref = _reference_step(u0, v0, vxt, vx, vy, vyt, inv_eig, dt, dx, dy, nu)
    np.testing.assert_allclose(np.asarray(u1), np.asarray(u_ref), rtol=2e-3, atol=2e-3)
    np.testing.assert_allclose(np.asarray(v1), np.asarray(v_ref), rtol=2e-3, atol=2e-3)
    assert np.all(np.isfinite(np.asarray(u1))) and np.all(np.isfinite(np.asarray(v1)))
    print("KERNEL_OK")
</pallas_src>

<mosaic_0001>
module attributes {stable_mosaic.version = 11 : i64} {
  func.func @kernel(%arg0: i32, %arg1: memref<64x128xf32, #tpu.memory_space<vmem>>, %arg2: memref<64x128xf32, #tpu.memory_space<vmem>>, %arg3: memref<64x64xf32, #tpu.memory_space<vmem>>, %arg4: memref<64x64xf32, #tpu.memory_space<vmem>>, %arg5: memref<128x128xf32, #tpu.memory_space<vmem>>, %arg6: memref<128x128xf32, #tpu.memory_space<vmem>>, %arg7: memref<64x128xf32, #tpu.memory_space<vmem>>, %arg8: memref<64x128xf32, #tpu.memory_space<vmem>>, %arg9: memref<64x128xf32, #tpu.memory_space<vmem>>) attributes {dimension_semantics = [#tpu.dimension_semantics<arbitrary>], iteration_bounds = array<i64: 1>, scalar_prefetch = 0 : i64, scratch_operands = 0 : i64, tpu.core_type = #tpu.core_type<tc>, window_params = [{pipeline_mode = #tpu.pipeline_mode<synchronous>, transform_indices = @transform_0, window_bounds = array<i64: 64, 128>}, {pipeline_mode = #tpu.pipeline_mode<synchronous>, transform_indices = @transform_1, window_bounds = array<i64: 64, 128>}, {pipeline_mode = #tpu.pipeline_mode<synchronous>, transform_indices = @transform_2, window_bounds = array<i64: 64, 64>}, {pipeline_mode = #tpu.pipeline_mode<synchronous>, transform_indices = @transform_3, window_bounds = array<i64: 64, 64>}, {pipeline_mode = #tpu.pipeline_mode<synchronous>, transform_indices = @transform_4, window_bounds = array<i64: 128, 128>}, {pipeline_mode = #tpu.pipeline_mode<synchronous>, transform_indices = @transform_5, window_bounds = array<i64: 128, 128>}, {pipeline_mode = #tpu.pipeline_mode<synchronous>, transform_indices = @transform_6, window_bounds = array<i64: 64, 128>}, {pipeline_mode = #tpu.pipeline_mode<synchronous>, transform_indices = @transform_7, window_bounds = array<i64: 64, 128>}, {pipeline_mode = #tpu.pipeline_mode<synchronous>, transform_indices = @transform_8, window_bounds = array<i64: 64, 128>}]} {
    %c0 = arith.constant 0 : index
    %c0_0 = arith.constant 0 : index
    %0 = vector.load %arg3[%c0, %c0_0] : memref<64x64xf32, #tpu.memory_space<vmem>>, vector<64x64xf32>
    %c0_1 = arith.constant 0 : index
    %c0_2 = arith.constant 0 : index
    %1 = vector.load %arg4[%c0_1, %c0_2] : memref<64x64xf32, #tpu.memory_space<vmem>>, vector<64x64xf32>
    %c0_3 = arith.constant 0 : index
    %c0_4 = arith.constant 0 : index
    %2 = vector.load %arg5[%c0_3, %c0_4] : memref<128x128xf32, #tpu.memory_space<vmem>>, vector<128x128xf32>
    %c0_5 = arith.constant 0 : index
    %c0_6 = arith.constant 0 : index
    %3 = vector.load %arg6[%c0_5, %c0_6] : memref<128x128xf32, #tpu.memory_space<vmem>>, vector<128x128xf32>
    %c0_7 = arith.constant 0 : index
    %c0_8 = arith.constant 0 : index
    %4 = vector.load %arg7[%c0_7, %c0_8] : memref<64x128xf32, #tpu.memory_space<vmem>>, vector<64x128xf32>
    %c0_9 = arith.constant 0 : index
    %c0_10 = arith.constant 0 : index
    %5 = vector.load %arg1[%c0_9, %c0_10] : memref<64x128xf32, #tpu.memory_space<vmem>>, vector<64x128xf32>
    %c0_11 = arith.constant 0 : index
    %c0_12 = arith.constant 0 : index
    %6 = vector.load %arg2[%c0_11, %c0_12] : memref<64x128xf32, #tpu.memory_space<vmem>>, vector<64x128xf32>
    %c63_i32 = arith.constant 63 : i32
    %7 = tpu.dynamic_rotate %5 by %c63_i32 dim 0 : vector<64x128xf32>, i32 -> vector<64x128xf32>
    %c1_i32 = arith.constant 1 : i32
    %8 = tpu.dynamic_rotate %5 by %c1_i32 dim 0 : vector<64x128xf32>, i32 -> vector<64x128xf32>
    %c63_i32_13 = arith.constant 63 : i32
    %9 = tpu.dynamic_rotate %7 by %c63_i32_13 dim 0 : vector<64x128xf32>, i32 -> vector<64x128xf32>
    %c127_i32 = arith.constant 127 : i32
    %10 = tpu.dynamic_rotate %5 by %c127_i32 dim 1 : vector<64x128xf32>, i32 -> vector<64x128xf32>
    %c1_i32_14 = arith.constant 1 : i32
    %11 = tpu.dynamic_rotate %5 by %c1_i32_14 dim 1 : vector<64x128xf32>, i32 -> vector<64x128xf32>
    %c127_i32_15 = arith.constant 127 : i32
    %12 = tpu.dynamic_rotate %10 by %c127_i32_15 dim 1 : vector<64x128xf32>, i32 -> vector<64x128xf32>
    %c63_i32_16 = arith.constant 63 : i32
    %13 = tpu.dynamic_rotate %6 by %c63_i32_16 dim 0 : vector<64x128xf32>, i32 -> vector<64x128xf32>
    %c1_i32_17 = arith.constant 1 : i32
    %14 = tpu.dynamic_rotate %6 by %c1_i32_17 dim 0 : vector<64x128xf32>, i32 -> vector<64x128xf32>
    %c63_i32_18 = arith.constant 63 : i32
    %15 = tpu.dynamic_rotate %13 by %c63_i32_18 dim 0 : vector<64x128xf32>, i32 -> vector<64x128xf32>
    %c127_i32_19 = arith.constant 127 : i32
    %16 = tpu.dynamic_rotate %6 by %c127_i32_19 dim 1 : vector<64x128xf32>, i32 -> vector<64x128xf32>
    %c1_i32_20 = arith.constant 1 : i32
    %17 = tpu.dynamic_rotate %6 by %c1_i32_20 dim 1 : vector<64x128xf32>, i32 -> vector<64x128xf32>
    %c127_i32_21 = arith.constant 127 : i32
    %18 = tpu.dynamic_rotate %16 by %c127_i32_21 dim 1 : vector<64x128xf32>, i32 -> vector<64x128xf32>
    %19 = arith.addf %5, %7 : vector<64x128xf32>
    %cst = arith.constant 5.000000e-01 : f32
    %20 = vector.broadcast %cst : f32 to vector<64x128xf32>
    %21 = arith.mulf %20, %19 : vector<64x128xf32>
    %22 = arith.addf %6, %13 : vector<64x128xf32>
    %cst_22 = arith.constant 5.000000e-01 : f32
    %23 = vector.broadcast %cst_22 : f32 to vector<64x128xf32>
    %24 = arith.mulf %23, %22 : vector<64x128xf32>
    %25 = arith.addf %5, %10 : vector<64x128xf32>
    %cst_23 = arith.constant 5.000000e-01 : f32
    %26 = vector.broadcast %cst_23 : f32 to vector<64x128xf32>
    %27 = arith.mulf %26, %25 : vector<64x128xf32>
    %28 = arith.addf %6, %16 : vector<64x128xf32>
    %cst_24 = arith.constant 5.000000e-01 : f32
    %29 = vector.broadcast %cst_24 : f32 to vector<64x128xf32>
    %30 = arith.mulf %29, %28 : vector<64x128xf32>
    %cst_25 = arith.constant 0.000000e+00 : f32
    %31 = vector.broadcast %cst_25 : f32 to vector<64x128xf32>
    %32 = arith.cmpf ogt, %21, %31 : vector<64x128xf32>
    %33 = arith.subf %7, %5 : vector<64x128xf32>
    %cst_26 = arith.constant 0.010185916 : f32
    %34 = vector.broadcast %cst_26 : f32 to vector<64x128xf32>
    %35 = arith.mulf %34, %21 : vector<64x128xf32>
    %36 = arith.select %32, %5, %7 : vector<64x128xi1>, vector<64x128xf32>
    %cst_27 = arith.constant 1.000000e+00 : f32
    %37 = vector.broadcast %cst_27 : f32 to vector<64x128xf32>
    %38 = arith.subf %37, %35 : vector<64x128xf32>
    %cst_28 = arith.constant 5.000000e-01 : f32
    %39 = vector.broadcast %cst_28 : f32 to vector<64x128xf32>
    %40 = arith.mulf %39, %38 : vector<64x128xf32>
    %41 = arith.mulf %40, %33 : vector<64x128xf32>
    %42 = arith.addf %5, %41 : vector<64x128xf32>
    %cst_29 = arith.constant 1.000000e+00 : f32
    %43 = vector.broadcast %cst_29 : f32 to vector<64x128xf32>
    %44 = arith.addf %43, %35 : vector<64x128xf32>
    %cst_30 = arith.constant 5.000000e-01 : f32
    %45 = vector.broadcast %cst_30 : f32 to vector<64x128xf32>
    %46 = arith.mulf %45, %44 : vector<64x128xf32>
    %47 = arith.mulf %46, %33 : vector<64x128xf32>
    %48 = arith.subf %7, %47 : vector<64x128xf32>
    %49 = arith.select %32, %42, %48 : vector<64x128xi1>, vector<64x128xf32>
    %50 = arith.subf %5, %8 : vector<64x128xf32>
    %51 = arith.subf %9, %7 : vector<64x128xf32>
    %52 = arith.select %32, %50, %51 : vector<64x128xi1>, vector<64x128xf32>
    %53 = arith.mulf %52, %33 : vector<64x128xf32>
    %cst_31 = arith.constant 0.000000e+00 : f32
    %54 = vector.broadcast %cst_31 : f32 to vector<64x128xf32>
    %55 = arith.cmpf ogt, %53, %54 : vector<64x128xf32>
    %cst_32 = arith.constant 2.000000e+00 : f32
    %56 = vector.broadcast %cst_32 : f32 to vector<64x128xf32>
    %57 = arith.mulf %56, %52 : vector<64x128xf32>
    %58 = arith.addf %52, %33 : vector<64x128xf32>
    %59 = tpu.reciprocal %58 {approx = true} : vector<64x128xf32> -> vector<64x128xf32>
    %60 = arith.mulf %57, %59 : vector<64x128xf32>
    %cst_33 = arith.constant 0.000000e+00 : f32
    %61 = vector.broadcast %cst_33 : f32 to vector<64x128xf32>
    %62 = arith.select %55, %60, %61 : vector<64x128xi1>, vector<64x128xf32>
    %63 = arith.subf %49, %36 : vector<64x128xf32>
    %64 = arith.mulf %62, %63 : vector<64x128xf32>
    %65 = arith.addf %36, %64 : vector<64x128xf32>
    %66 = arith.mulf %65, %21 : vector<64x128xf32>
    %c1_i32_34 = arith.constant 1 : i32
    %67 = tpu.dynamic_rotate %66 by %c1_i32_34 dim 0 : vector<64x128xf32>, i32 -> vector<64x128xf32>
    %68 = arith.subf %66, %67 : vector<64x128xf32>
    %cst_35 = arith.constant 10.1859159 : f32
    %69 = vector.broadcast %cst_35 : f32 to vector<64x128xf32>
    %70 = arith.mulf %68, %69 : vector<64x128xf32>
    %cst_36 = arith.constant 0.000000e+00 : f32
    %71 = vector.broadcast %cst_36 : f32 to vector<64x128xf32>
    %72 = arith.cmpf ogt, %24, %71 : vector<64x128xf32>
    %73 = arith.subf %10, %5 : vector<64x128xf32>
    %cst_37 = arith.constant 0.020371832 : f32
    %74 = vector.broadcast %cst_37 : f32 to vector<64x128xf32>
    %75 = arith.mulf %74, %24 : vector<64x128xf32>
    %76 = arith.select %72, %5, %10 : vector<64x128xi1>, vector<64x128xf32>
    %cst_38 = arith.constant 1.000000e+00 : f32
    %77 = vector.broadcast %cst_38 : f32 to vector<64x128xf32>
    %78 = arith.subf %77, %75 : vector<64x128xf32>
    %cst_39 = arith.constant 5.000000e-01 : f32
    %79 = vector.broadcast %cst_39 : f32 to vector<64x128xf32>
    %80 = arith.mulf %79, %78 : vector<64x128xf32>
    %81 = arith.mulf %80, %73 : vector<64x128xf32>
    %82 = arith.addf %5, %81 : vector<64x128xf32>
    %cst_40 = arith.constant 1.000000e+00 : f32
    %83 = vector.broadcast %cst_40 : f32 to vector<64x128xf32>
    %84 = arith.addf %83, %75 : vector<64x128xf32>
    %cst_41 = arith.constant 5.000000e-01 : f32
    %85 = vector.broadcast %cst_41 : f32 to vector<64x128xf32>
    %86 = arith.mulf %85, %84 : vector<64x128xf32>
    %87 = arith.mulf %86, %73 : vector<64x128xf32>
    %88 = arith.subf %10, %87 : vector<64x128xf32>
    %89 = arith.select %72, %82, %88 : vector<64x128xi1>, vector<64x128xf32>
    %90 = arith.subf %5, %11 : vector<64x128xf32>
    %91 = arith.subf %12, %10 : vector<64x128xf32>
    %92 = arith.select %72, %90, %91 : vector<64x128xi1>, vector<64x128xf32>
    %93 = arith.mulf %92, %73 : vector<64x128xf32>
    %cst_42 = arith.constant 0.000000e+00 : f32
    %94 = vector.broadcast %cst_42 : f32 to vector<64x128xf32>
    %95 = arith.cmpf ogt, %93, %94 : vector<64x128xf32>
    %cst_43 = arith.constant 2.000000e+00 : f32
    %96 = vector.broadcast %cst_43 : f32 to vector<64x128xf32>
    %97 = arith.mulf %96, %92 : vector<64x128xf32>
    %98 = arith.addf %92, %73 : vector<64x128xf32>
    %99 = tpu.reciprocal %98 {approx = true} : vector<64x128xf32> -> vector<64x128xf32>
    %100 = arith.mulf %97, %99 : vector<64x128xf32>
    %cst_44 = arith.constant 0.000000e+00 : f32
    %101 = vector.broadcast %cst_44 : f32 to vector<64x128xf32>
    %102 = arith.select %95, %100, %101 : vector<64x128xi1>, vector<64x128xf32>
    %103 = arith.subf %89, %76 : vector<64x128xf32>
    %104 = arith.mulf %102, %103 : vector<64x128xf32>
    %105 = arith.addf %76, %104 : vector<64x128xf32>
    %106 = arith.mulf %105, %24 : vector<64x128xf32>
    %c1_i32_45 = arith.constant 1 : i32
    %107 = tpu.dynamic_rotate %106 by %c1_i32_45 dim 1 : vector<64x128xf32>, i32 -> vector<64x128xf32>
    %108 = arith.subf %106, %107 : vector<64x128xf32>
    %cst_46 = arith.constant 20.3718319 : f32
    %109 = vector.broadcast %cst_46 : f32 to vector<64x128xf32>
    %110 = arith.mulf %108, %109 : vector<64x128xf32>
    %111 = arith.addf %70, %110 : vector<64x128xf32>
    %112 = arith.addf %7, %8 : vector<64x128xf32>
    %cst_47 = arith.constant 2.000000e+00 : f32
    %113 = vector.broadcast %cst_47 : f32 to vector<64x128xf32>
    %114 = arith.mulf %113, %5 : vector<64x128xf32>
    %115 = arith.subf %112, %114 : vector<64x128xf32>
    %cst_48 = arith.constant 103.752892 : f32
    %116 = vector.broadcast %cst_48 : f32 to vector<64x128xf32>
    %117 = arith.mulf %115, %116 : vector<64x128xf32>
    %118 = arith.addf %10, %11 : vector<64x128xf32>
    %cst_49 = arith.constant 2.000000e+00 : f32
    %119 = vector.broadcast %cst_49 : f32 to vector<64x128xf32>
    %120 = arith.mulf %119, %5 : vector<64x128xf32>
    %121 = arith.subf %118, %120 : vector<64x128xf32>
    %cst_50 = arith.constant 415.011566 : f32
    %122 = vector.broadcast %cst_50 : f32 to vector<64x128xf32>
    %123 = arith.mulf %121, %122 : vector<64x128xf32>
    %124 = arith.addf %117, %123 : vector<64x128xf32>
    %cst_51 = arith.constant 1.000000e-03 : f32
    %125 = vector.broadcast %cst_51 : f32 to vector<64x128xf32>
    %126 = arith.mulf %125, %124 : vector<64x128xf32>
    %127 = arith.subf %126, %111 : vector<64x128xf32>
    %cst_52 = arith.constant 0.000000e+00 : f32
    %128 = vector.broadcast %cst_52 : f32 to vector<64x128xf32>
    %129 = arith.cmpf ogt, %27, %128 : vector<64x128xf32>
    %130 = arith.subf %13, %6 : vector<64x128xf32>
    %cst_53 = arith.constant 0.010185916 : f32
    %131 = vector.broadcast %cst_53 : f32 to vector<64x128xf32>
    %132 = arith.mulf %131, %27 : vector<64x128xf32>
    %133 = arith.select %129, %6, %13 : vector<64x128xi1>, vector<64x128xf32>
    %cst_54 = arith.constant 1.000000e+00 : f32
    %134 = vector.broadcast %cst_54 : f32 to vector<64x128xf32>
    %135 = arith.subf %134, %132 : vector<64x128xf32>
    %cst_55 = arith.constant 5.000000e-01 : f32
    %136 = vector.broadcast %cst_55 : f32 to vector<64x128xf32>
    %137 = arith.mulf %136, %135 : vector<64x128xf32>
    %138 = arith.mulf %137, %130 : vector<64x128xf32>
    %139 = arith.addf %6, %138 : vector<64x128xf32>
    %cst_56 = arith.constant 1.000000e+00 : f32
    %140 = vector.broadcast %cst_56 : f32 to vector<64x128xf32>
    %141 = arith.addf %140, %132 : vector<64x128xf32>
    %cst_57 = arith.constant 5.000000e-01 : f32
    %142 = vector.broadcast %cst_57 : f32 to vector<64x128xf32>
    %143 = arith.mulf %142, %141 : vector<64x128xf32>
    %144 = arith.mulf %143, %130 : vector<64x128xf32>
    %145 = arith.subf %13, %144 : vector<64x128xf32>
    %146 = arith.select %129, %139, %145 : vector<64x128xi1>, vector<64x128xf32>
    %147 = arith.subf %6, %14 : vector<64x128xf32>
    %148 = arith.subf %15, %13 : vector<64x128xf32>
    %149 = arith.select %129, %147, %148 : vector<64x128xi1>, vector<64x128xf32>
    %150 = arith.mulf %149, %130 : vector<64x128xf32>
    %cst_58 = arith.constant 0.000000e+00 : f32
    %151 = vector.broadcast %cst_58 : f32 to vector<64x128xf32>
    %152 = arith.cmpf ogt, %150, %151 : vector<64x128xf32>
    %cst_59 = arith.constant 2.000000e+00 : f32
    %153 = vector.broadcast %cst_59 : f32 to vector<64x128xf32>
    %154 = arith.mulf %153, %149 : vector<64x128xf32>
    %155 = arith.addf %149, %130 : vector<64x128xf32>
    %156 = tpu.reciprocal %155 {approx = true} : vector<64x128xf32> -> vector<64x128xf32>
    %157 = arith.mulf %154, %156 : vector<64x128xf32>
    %cst_60 = arith.constant 0.000000e+00 : f32
    %158 = vector.broadcast %cst_60 : f32 to vector<64x128xf32>
    %159 = arith.select %152, %157, %158 : vector<64x128xi1>, vector<64x128xf32>
    %160 = arith.subf %146, %133 : vector<64x128xf32>
    %161 = arith.mulf %159, %160 : vector<64x128xf32>
    %162 = arith.addf %133, %161 : vector<64x128xf32>
    %163 = arith.mulf %162, %27 : vector<64x128xf32>
    %c1_i32_61 = arith.constant 1 : i32
    %164 = tpu.dynamic_rotate %163 by %c1_i32_61 dim 0 : vector<64x128xf32>, i32 -> vector<64x128xf32>
    %165 = arith.subf %163, %164 : vector<64x128xf32>
    %cst_62 = arith.constant 10.1859159 : f32
    %166 = vector.broadcast %cst_62 : f32 to vector<64x128xf32>
    %167 = arith.mulf %165, %166 : vector<64x128xf32>
    %cst_63 = arith.constant 0.000000e+00 : f32
    %168 = vector.broadcast %cst_63 : f32 to vector<64x128xf32>
    %169 = arith.cmpf ogt, %30, %168 : vector<64x128xf32>
    %170 = arith.subf %16, %6 : vector<64x128xf32>
    %cst_64 = arith.constant 0.020371832 : f32
    %171 = vector.broadcast %cst_64 : f32 to vector<64x128xf32>
    %172 = arith.mulf %171, %30 : vector<64x128xf32>
    %173 = arith.select %169, %6, %16 : vector<64x128xi1>, vector<64x128xf32>
    %cst_65 = arith.constant 1.000000e+00 : f32
    %174 = vector.broadcast %cst_65 : f32 to vector<64x128xf32>
    %175 = arith.subf %174, %172 : vector<64x128xf32>
    %cst_66 = arith.constant 5.000000e-01 : f32
    %176 = vector.broadcast %cst_66 : f32 to vector<64x128xf32>
    %177 = arith.mulf %176, %175 : vector<64x128xf32>
    %178 = arith.mulf %177, %170 : vector<64x128xf32>
    %179 = arith.addf %6, %178 : vector<64x128xf32>
    %cst_67 = arith.constant 1.000000e+00 : f32
    %180 = vector.broadcast %cst_67 : f32 to vector<64x128xf32>
    %181 = arith.addf %180, %172 : vector<64x128xf32>
    %cst_68 = arith.constant 5.000000e-01 : f32
    %182 = vector.broadcast %cst_68 : f32 to vector<64x128xf32>
    %183 = arith.mulf %182, %181 : vector<64x128xf32>
    %184 = arith.mulf %183, %170 : vector<64x128xf32>
    %185 = arith.subf %16, %184 : vector<64x128xf32>
    %186 = arith.select %169, %179, %185 : vector<64x128xi1>, vector<64x128xf32>
    %187 = arith.subf %6, %17 : vector<64x128xf32>
    %188 = arith.subf %18, %16 : vector<64x128xf32>
    %189 = arith.select %169, %187, %188 : vector<64x128xi1>, vector<64x128xf32>
    %190 = arith.mulf %189, %170 : vector<64x128xf32>
    %cst_69 = arith.constant 0.000000e+00 : f32
    %191 = vector.broadcast %cst_69 : f32 to vector<64x128xf32>
    %192 = arith.cmpf ogt, %190, %191 : vector<64x128xf32>
    %cst_70 = arith.constant 2.000000e+00 : f32
    %193 = vector.broadcast %cst_70 : f32 to vector<64x128xf32>
    %194 = arith.mulf %193, %189 : vector<64x128xf32>
    %195 = arith.addf %189, %170 : vector<64x128xf32>
    %196 = tpu.reciprocal %195 {approx = true} : vector<64x128xf32> -> vector<64x128xf32>
    %197 = arith.mulf %194, %196 : vector<64x128xf32>
    %cst_71 = arith.constant 0.000000e+00 : f32
    %198 = vector.broadcast %cst_71 : f32 to vector<64x128xf32>
    %199 = arith.select %192, %197, %198 : vector<64x128xi1>, vector<64x128xf32>
    %200 = arith.subf %186, %173 : vector<64x128xf32>
    %201 = arith.mulf %199, %200 : vector<64x128xf32>
    %202 = arith.addf %173, %201 : vector<64x128xf32>
    %203 = arith.mulf %202, %30 : vector<64x128xf32>
    %c1_i32_72 = arith.constant 1 : i32
    %204 = tpu.dynamic_rotate %203 by %c1_i32_72 dim 1 : vector<64x128xf32>, i32 -> vector<64x128xf32>
    %205 = arith.subf %203, %204 : vector<64x128xf32>
    %cst_73 = arith.constant 20.3718319 : f32
    %206 = vector.broadcast %cst_73 : f32 to vector<64x128xf32>
    %207 = arith.mulf %205, %206 : vector<64x128xf32>
    %208 = arith.addf %167, %207 : vector<64x128xf32>
    %209 = arith.addf %13, %14 : vector<64x128xf32>
    %cst_74 = arith.constant 2.000000e+00 : f32
    %210 = vector.broadcast %cst_74 : f32 to vector<64x128xf32>
    %211 = arith.mulf %210, %6 : vector<64x128xf32>
    %212 = arith.subf %209, %211 : vector<64x128xf32>
    %cst_75 = arith.constant 103.752892 : f32
    %213 = vector.broadcast %cst_75 : f32 to vector<64x128xf32>
    %214 = arith.mulf %212, %213 : vector<64x128xf32>
    %215 = arith.addf %16, %17 : vector<64x128xf32>
    %cst_76 = arith.constant 2.000000e+00 : f32
    %216 = vector.broadcast %cst_76 : f32 to vector<64x128xf32>
    %217 = arith.mulf %216, %6 : vector<64x128xf32>
    %218 = arith.subf %215, %217 : vector<64x128xf32>
    %cst_77 = arith.constant 415.011566 : f32
    %219 = vector.broadcast %cst_77 : f32 to vector<64x128xf32>
    %220 = arith.mulf %218, %219 : vector<64x128xf32>
    %221 = arith.addf %214, %220 : vector<64x128xf32>
    %cst_78 = arith.constant 1.000000e-03 : f32
    %222 = vector.broadcast %cst_78 : f32 to vector<64x128xf32>
    %223 = arith.mulf %222, %221 : vector<64x128xf32>
    %224 = arith.subf %223, %208 : vector<64x128xf32>
    %cst_79 = arith.constant 1.000000e-03 : f32
    %225 = vector.broadcast %cst_79 : f32 to vector<64x128xf32>
    %226 = arith.mulf %225, %127 : vector<64x128xf32>
    %227 = arith.addf %5, %226 : vector<64x128xf32>
    %cst_80 = arith.constant 1.000000e-03 : f32
    %228 = vector.broadcast %cst_80 : f32 to vector<64x128xf32>
    %229 = arith.mulf %228, %224 : vector<64x128xf32>
    %230 = arith.addf %6, %229 : vector<64x128xf32>
    %c1_i32_81 = arith.constant 1 : i32
    %231 = tpu.dynamic_rotate %227 by %c1_i32_81 dim 0 : vector<64x128xf32>, i32 -> vector<64x128xf32>
    %232 = arith.subf %227, %231 : vector<64x128xf32>
    %cst_82 = arith.constant 10.1859159 : f32
    %233 = vector.broadcast %cst_82 : f32 to vector<64x128xf32>
    %234 = arith.mulf %232, %233 : vector<64x128xf32>
    %c1_i32_83 = arith.constant 1 : i32
    %235 = tpu.dynamic_rotate %230 by %c1_i32_83 dim 1 : vector<64x128xf32>, i32 -> vector<64x128xf32>
    %236 = arith.subf %230, %235 : vector<64x128xf32>
    %cst_84 = arith.constant 20.3718319 : f32
    %237 = vector.broadcast %cst_84 : f32 to vector<64x128xf32>
    %238 = arith.mulf %236, %237 : vector<64x128xf32>
    %239 = arith.addf %234, %238 : vector<64x128xf32>
    %cst_85 = arith.constant dense<0.000000e+00> : vector<64x128xf32>
    %240 = tpu.matmul %0, %239, %cst_85 {dimension_numbers = #tpu.dot_dimension_numbers<[1], [0], [0], [1], [0, 0, 1, 1], [], []>} : vector<64x64xf32>, vector<64x128xf32>, vector<64x128xf32> -> vector<64x128xf32>
    %cst_86 = arith.constant dense<0.000000e+00> : vector<64x128xf32>
    %241 = tpu.matmul %240, %2, %cst_86 {dimension_numbers = #tpu.dot_dimension_numbers<[1], [0], [0], [1], [0, 0, 1, 1], [], []>} : vector<64x128xf32>, vector<128x128xf32>, vector<64x128xf32> -> vector<64x128xf32>
    %242 = arith.mulf %241, %4 : vector<64x128xf32>
    %cst_87 = arith.constant dense<0.000000e+00> : vector<64x128xf32>
    %243 = tpu.matmul %1, %242, %cst_87 {dimension_numbers = #tpu.dot_dimension_numbers<[1], [0], [0], [1], [0, 0, 1, 1], [], []>} : vector<64x64xf32>, vector<64x128xf32>, vector<64x128xf32> -> vector<64x128xf32>
    %cst_88 = arith.constant dense<0.000000e+00> : vector<64x128xf32>
    %244 = tpu.matmul %243, %3, %cst_88 {dimension_numbers = #tpu.dot_dimension_numbers<[1], [0], [0], [1], [0, 0, 1, 1], [], []>} : vector<64x128xf32>, vector<128x128xf32>, vector<64x128xf32> -> vector<64x128xf32>
    %c63_i32_89 = arith.constant 63 : i32
    %245 = tpu.dynamic_rotate %244 by %c63_i32_89 dim 0 : vector<64x128xf32>, i32 -> vector<64x128xf32>
    %246 = arith.subf %245, %244 : vector<64x128xf32>
    %cst_90 = arith.constant 10.1859159 : f32
    %247 = vector.broadcast %cst_90 : f32 to vector<64x128xf32>
    %248 = arith.mulf %246, %247 : vector<64x128xf32>
    %249 = arith.subf %227, %248 : vector<64x128xf32>
    %c127_i32_91 = arith.constant 127 : i32
    %250 = tpu.dynamic_rotate %244 by %c127_i32_91 dim 1 : vector<64x128xf32>, i32 -> vector<64x128xf32>
    %251 = arith.subf %250, %244 : vector<64x128xf32>
    %cst_92 = arith.constant 20.3718319 : f32
    %252 = vector.broadcast %cst_92 : f32 to vector<64x128xf32>
    %253 = arith.mulf %251, %252 : vector<64x128xf32>
    %254 = arith.subf %230, %253 : vector<64x128xf32>
    %c0_93 = arith.constant 0 : index
    %c0_94 = arith.constant 0 : index
    %255 = vector.load %arg8[%c0_93, %c0_94] : memref<64x128xf32, #tpu.memory_space<vmem>>, vector<64x128xf32>
    tpu.vector_store %arg8[%c0_93, %c0_94], %249 {strides = array<i32>} : memref<64x128xf32, #tpu.memory_space<vmem>>, vector<64x128xf32>,
    %c0_95 = arith.constant 0 : index
    %c0_96 = arith.constant 0 : index
    %256 = vector.load %arg9[%c0_95, %c0_96] : memref<64x128xf32, #tpu.memory_space<vmem>>, vector<64x128xf32>
    tpu.vector_store %arg9[%c0_95, %c0_96], %254 {strides = array<i32>} : memref<64x128xf32, #tpu.memory_space<vmem>>, vector<64x128xf32>,
    return
  }
  func.func @transform_0(%arg0: i32) -> (i32, i32) {
    %c0_i32 = arith.constant 0 : i32
    %c0_i32_0 = arith.constant 0 : i32
    %c0_i32_1 = arith.constant 0 : i32
    return %c0_i32, %c0_i32_0 : i32, i32
  }
  func.func @transform_1(%arg0: i32) -> (i32, i32) {
    %c0_i32 = arith.constant 0 : i32
    %c0_i32_0 = arith.constant 0 : i32
    %c0_i32_1 = arith.constant 0 : i32
    return %c0_i32, %c0_i32_0 : i32, i32
  }
  func.func @transform_2(%arg0: i32) -> (i32, i32) {
    %c0_i32 = arith.constant 0 : i32
    %c0_i32_0 = arith.constant 0 : i32
    %c0_i32_1 = arith.constant 0 : i32
    return %c0_i32, %c0_i32_0 : i32, i32
  }
  func.func @transform_3(%arg0: i32) -> (i32, i32) {
    %c0_i32 = arith.constant 0 : i32
    %c0_i32_0 = arith.constant 0 : i32
    %c0_i32_1 = arith.constant 0 : i32
    return %c0_i32, %c0_i32_0 : i32, i32
  }
  func.func @transform_4(%arg0: i32) -> (i32, i32) {
    %c0_i32 = arith.constant 0 : i32
    %c0_i32_0 = arith.constant 0 : i32
    %c0_i32_1 = arith.constant 0 : i32
    return %c0_i32, %c0_i32_0 : i32, i32
  }
  func.func @transform_5(%arg0: i32) -> (i32, i32) {
    %c0_i32 = arith.constant 0 : i32
    %c0_i32_0 = arith.constant 0 : i32
    %c0_i32_1 = arith.constant 0 : i32
    return %c0_i32, %c0_i32_0 : i32, i32
  }
  func.func @transform_6(%arg0: i32) -> (i32, i32) {
    %c0_i32 = arith.constant 0 : i32
    %c0_i32_0 = arith.constant 0 : i32
    %c0_i32_1 = arith.constant 0 : i32
    return %c0_i32, %c0_i32_0 : i32, i32
  }
  func.func @transform_7(%arg0: i32) -> (i32, i32) {
    %c0_i32 = arith.constant 0 : i32
    %c0_i32_0 = arith.constant 0 : i32
    %c0_i32_1 = arith.constant 0 : i32
    return %c0_i32, %c0_i32_0 : i32, i32
  }
  func.func @transform_8(%arg0: i32) -> (i32, i32) {
    %c0_i32 = arith.constant 0 : i32
    %c0_i32_0 = arith.constant 0 : i32
    %c0_i32_1 = arith.constant 0 : i32
    return %c0_i32, %c0_i32_0 : i32, i32
  }
}

</mosaic_0001>

<llo_original>
// kernel: tpu_custom_call.1
$region0: #{tpu_custom_call.1}
  #allocation0 [shape = 'u32[]', space=smem, size = 0x4, offset = 0x4, fixed_abs, tag = 'smem constant byte address 0x4 - core index']
  #allocation1 [shape = 'u32[144,128]{1,0:T(1,128)}', space=vmem, size = 0x12000, scoped, tag = 'internal scratch']
  %s0 = inlined_call_operand.hbm [shape: f32[64,128], index: 0, kind: input, shape index: {}]
  %s1 = inlined_call_operand.hbm [shape: f32[64,128], index: 1, kind: input, shape index: {}]
  %s2 = inlined_call_operand.hbm [shape: f32[64,64], index: 2, kind: input, shape index: {}]
  %s3 = inlined_call_operand.hbm [shape: f32[64,64], index: 3, kind: input, shape index: {}]
  %s4 = inlined_call_operand.hbm [shape: f32[128,128], index: 4, kind: input, shape index: {}]
  %s5 = inlined_call_operand.hbm [shape: f32[128,128], index: 5, kind: input, shape index: {}]
  %s6 = inlined_call_operand.hbm [shape: f32[64,128], index: 6, kind: input, shape index: {}]
  %s7 = inlined_call_operand.hbm [shape: f32[64,128], index: 7, kind: output, shape index: {0}]
  %s8 = inlined_call_operand.hbm [shape: f32[64,128], index: 8, kind: output, shape index: {1}]
  %9 = xla_tuple %s7, %s8
  %s10 = sld [smem:[#allocation0]]
  $region74: #{tpu_custom_call.1} parent=0
    _
  %s12 = ssub.s32 1, %s10
  %s13 = scalar_select 0, %s12, %s10
  $region1: #{tpu_custom_call.1} parent=0
    #allocation2 [shape = 'u8[32768]{0}', space=vmem, size = 0x8000, scoped, tag = 'input window, operand 0, single buffered']
    #allocation3 [shape = 's32[1]{0}', space=sflag, size = 0x4, scoped, tag = 'scoped memory for tpu_custom_call.1']
    #allocation4 [shape = 's32[1]{0}', space=sflag, size = 0x4, scoped, tag = 'scoped memory for tpu_custom_call.1']
    #allocation5 [shape = 'u8[32768]{0}', space=vmem, size = 0x8000, scoped, tag = 'input window, operand 1, single buffered']
    #allocation6 [shape = 's32[1]{0}', space=sflag, size = 0x4, scoped, tag = 'scoped memory for tpu_custom_call.1']
    #allocation7 [shape = 'u8[32768]{0}', space=vmem, size = 0x8000, scoped, tag = 'input window, operand 2, single buffered']
    #allocation8 [shape = 'u8[32768]{0}', space=vmem, size = 0x8000, scoped, tag = 'input window, operand 3, single buffered']
    #allocation9 [shape = 's32[1]{0}', space=sflag, size = 0x4, scoped, tag = 'scoped memory for tpu_custom_call.1']
    #allocation10 [shape = 'u8[65536]{0}', space=vmem, size = 0x10000, scoped, tag = 'input window, operand 4, single buffered']
    #allocation11 [shape = 'u8[65536]{0}', space=vmem, size = 0x10000, scoped, tag = 'input window, operand 5, single buffered']
    #allocation12 [shape = 's32[1]{0}', space=sflag, size = 0x4, scoped, tag = 'scoped memory for tpu_custom_call.1']
    #allocation13 [shape = 'u8[32768]{0}', space=vmem, size = 0x8000, scoped, tag = 'input window, operand 6, single buffered']
    #allocation14 [shape = 'u8[32768]{0}', space=vmem, size = 0x8000, scoped, tag = 'output window, operand 0, single buffered']
    #allocation15 [shape = 'u8[32768]{0}', space=vmem, size = 0x8000, scoped, tag = 'output window, operand 1, single buffered']
    #allocation16 [shape = 's32[1]{0}', space=sflag, size = 0x4, scoped, tag = 'scoped memory for tpu_custom_call.1']
    %14 = vsyncpa [#allocation3], 0
    %15 = vsyncpa [#allocation6], 0
    %16 = vsyncpa [#allocation9], 0
    %17 = vsyncpa [#allocation12], 0
    %18 = vsyncpa [#allocation4], 0
    %19 = vsyncpa [#allocation16], 0
    // Predicated region
    $region2: #{tpu_custom_call.1} parent=1 // pred_check
      _
    $region3: #{tpu_custom_call.1} parent=1 // pred_check_branch
      %21 = sbr.rel (0) target = $region5
    $region4: #{tpu_custom_call.1} parent=1 // pred_region
      %s23 = ssub.s32 1024, 1024
      %24 = vsyncadd [#allocation3], %s23
      %s25 = sshll.u32 [#allocation2], 4
      %s26 = int_to_ptr.vmem [resolvable:$true] %s25
      %31 = dma.hbm_to_vmem [thread:$0]  %s0, 1024, %s26, [#allocation3], 128, 128, 8
    $region5: #{tpu_custom_call.1} parent=1 // pred_fallthru
      _
    // Predicated region
    $region6: #{tpu_custom_call.1} parent=1 // pred_check
      _
    $region7: #{tpu_custom_call.1} parent=1 // pred_check_branch
      %33 = sbr.rel (0) target = $region9
    $region8: #{tpu_custom_call.1} parent=1 // pred_region
      %s35 = ssub.s32 1024, 1024
      %36 = vsyncadd [#allocation6], %s35
      %s37 = sshll.u32 [#allocation5], 4
      %s38 = int_to_ptr.vmem [resolvable:$true] %s37
      %43 = dma.hbm_to_vmem [thread:$0]  %s1, 1024, %s38, [#allocation6], 128, 128, 8
    $region9: #{tpu_custom_call.1} parent=1 // pred_fallthru
      _
    // Predicated region
    $region10: #{tpu_custom_call.1} parent=1 // pred_check
      _
    $region11: #{tpu_custom_call.1} parent=1 // pred_check_branch
      %45 = sbr.rel (0) target = $region13
    $region12: #{tpu_custom_call.1} parent=1 // pred_region
      %s47 = ssub.s32 1024, 1024
      %48 = vsyncadd [#allocation6], %s47
      %s49 = sshll.u32 [#allocation7], 4
      %s50 = int_to_ptr.vmem [resolvable:$true] %s49
      %55 = dma.hbm_to_vmem [thread:$0]  %s2, 1024, %s50, [#allocation6], 128, 128, 8
    $region13: #{tpu_custom_call.1} parent=1 // pred_fallthru
      _
    // Predicated region
    $region14: #{tpu_custom_call.1} parent=1 // pred_check
      _
    $region15: #{tpu_custom_call.1} parent=1 // pred_check_branch
      %57 = sbr.rel (0) target = $region17
    $region16: #{tpu_custom_call.1} parent=1 // pred_region
      %s59 = ssub.s32 1024, 1024
      %60 = vsyncadd [#allocation9], %s59
      %s61 = sshll.u32 [#allocation8], 4
      %s62 = int_to_ptr.vmem [resolvable:$true] %s61
      %67 = dma.hbm_to_vmem [thread:$0]  %s3, 1024, %s62, [#allocation9], 128, 128, 8
    $region17: #{tpu_custom_call.1} parent=1 // pred_fallthru
      _
    // Predicated region
    $region18: #{tpu_custom_call.1} parent=1 // pred_check
      _
    $region19: #{tpu_custom_call.1} parent=1 // pred_check_branch
      %69 = sbr.rel (0) target = $region21
    $region20: #{tpu_custom_call.1} parent=1 // pred_region
      %s71 = ssub.s32 2048, 2048
      %72 = vsyncadd [#allocation9], %s71
      %s73 = sshll.u32 [#allocation10], 4
      %s74 = int_to_ptr.vmem [resolvable:$true] %s73
      %79 = dma.hbm_to_vmem [thread:$0]  %s4, 2048, %s74, [#allocation9], 128, 128, 8
    $region21: #{tpu_custom_call.1} parent=1 // pred_fallthru
      _
    // Predicated region
    $region22: #{tpu_custom_call.1} parent=1 // pred_check
      _
    $region23: #{tpu_custom_call.1} parent=1 // pred_check_branch
      %81 = sbr.rel (0) target = $region25
    $region24: #{tpu_custom_call.1} parent=1 // pred_region
      %s83 = ssub.s32 2048, 2048
      %84 = vsyncadd [#allocation12], %s83
      %s85 = sshll.u32 [#allocation11], 4
      %s86 = int_to_ptr.vmem [resolvable:$true] %s85
      %91 = dma.hbm_to_vmem [thread:$0]  %s5, 2048, %s86, [#allocation12], 128, 128, 8
    $region25: #{tpu_custom_call.1} parent=1 // pred_fallthru
      _
    // Predicated region
    $region26: #{tpu_custom_call.1} parent=1 // pred_check
      _
    $region27: #{tpu_custom_call.1} parent=1 // pred_check_branch
      %93 = sbr.rel (0) target = $region29
    $region28: #{tpu_custom_call.1} parent=1 // pred_region
      %s95 = ssub.s32 1024, 1024
      %96 = vsyncadd [#allocation12], %s95
      %s97 = sshll.u32 [#allocation13], 4
      %s98 = int_to_ptr.vmem [resolvable:$true] %s97
      %103 = dma.hbm_to_vmem [thread:$0]  %s6, 1024, %s98, [#allocation12], 128, 128, 8
    $region29: #{tpu_custom_call.1} parent=1 // pred_fallthru
      _
    // Predicated region
    $region30: #{tpu_custom_call.1} parent=1 // pred_check
      _
    $region31: #{tpu_custom_call.1} parent=1 // pred_check_branch
      %105 = sbr.rel (0) target = $region33
    $region32: #{tpu_custom_call.1} parent=1 // pred_region
      %106 = dma.done [#allocation3], 1024
    $region33: #{tpu_custom_call.1} parent=1 // pred_fallthru
      _
    // Predicated region
    $region34: #{tpu_custom_call.1} parent=1 // pred_check
      _
    $region35: #{tpu_custom_call.1} parent=1 // pred_check_branch
      %108 = sbr.rel (0) target = $region37
    $region36: #{tpu_custom_call.1} parent=1 // pred_region
      %109 = dma.done [#allocation6], 1024
    $region37: #{tpu_custom_call.1} parent=1 // pred_fallthru
      _
    // Predicated region
    $region38: #{tpu_custom_call.1} parent=1 // pred_check
      _
    $region39: #{tpu_custom_call.1} parent=1 // pred_check_branch
      %111 = sbr.rel (0) target = $region41
    $region40: #{tpu_custom_call.1} parent=1 // pred_region
      %112 = dma.done [#allocation6], 1024
    $region41: #{tpu_custom_call.1} parent=1 // pred_fallthru
      _
    // Predicated region
    $region42: #{tpu_custom_call.1} parent=1 // pred_check
      _
    $region43: #{tpu_custom_call.1} parent=1 // pred_check_branch
      %114 = sbr.rel (0) target = $region45
    $region44: #{tpu_custom_call.1} parent=1 // pred_region
      %115 = dma.done [#allocation9], 1024
    $region45: #{tpu_custom_call.1} parent=1 // pred_fallthru
      _
    // Predicated region
    $region46: #{tpu_custom_call.1} parent=1 // pred_check
      _
    $region47: #{tpu_custom_call.1} parent=1 // pred_check_branch
      %117 = sbr.rel (0) target = $region49
    $region48: #{tpu_custom_call.1} parent=1 // pred_region
      %118 = dma.done [#allocation9], 2048
    $region49: #{tpu_custom_call.1} parent=1 // pred_fallthru
      _
    // Predicated region
    $region50: #{tpu_custom_call.1} parent=1 // pred_check
      _
    $region51: #{tpu_custom_call.1} parent=1 // pred_check_branch
      %120 = sbr.rel (0) target = $region53
    $region52: #{tpu_custom_call.1} parent=1 // pred_region
      %121 = dma.done [#allocation12], 2048
    $region53: #{tpu_custom_call.1} parent=1 // pred_fallthru
      _
    // Predicated region
    $region54: #{tpu_custom_call.1} parent=1 // pred_check
      _
    $region55: #{tpu_custom_call.1} parent=1 // pred_check_branch
      %123 = sbr.rel (0) target = $region57
    $region56: #{tpu_custom_call.1} parent=1 // pred_region
      %124 = dma.done [#allocation12], 1024
    $region57: #{tpu_custom_call.1} parent=1 // pred_fallthru
      _
    %v125 = vld [vmem:[#allocation7] sm:$0xff]
    %v126 = vld [vmem:[#allocation7 + $0x8] sm:$0xff]
    %v127 = vld [vmem:[#allocation7 + $0x10] sm:$0xff]
    %v128 = vld [vmem:[#allocation7 + $0x18] sm:$0xff]
    %v129 = vld [vmem:[#allocation7 + $0x20] sm:$0xff]
    %v130 = vld [vmem:[#allocation7 + $0x28] sm:$0xff]
    %v131 = vld [vmem:[#allocation7 + $0x30] sm:$0xff]
    %v132 = vld [vmem:[#allocation7 + $0x38] sm:$0xff]
    %v133 = vld [vmem:[#allocation8] sm:$0xff]
    %v134 = vld [vmem:[#allocation8 + $0x8] sm:$0xff]
    %v135 = vld [vmem:[#allocation8 + $0x10] sm:$0xff]
    %v136 = vld [vmem:[#allocation8 + $0x18] sm:$0xff]
    %v137 = vld [vmem:[#allocation8 + $0x20] sm:$0xff]
    %v138 = vld [vmem:[#allocation8 + $0x28] sm:$0xff]
    %v139 = vld [vmem:[#allocation8 + $0x30] sm:$0xff]
    %v140 = vld [vmem:[#allocation8 + $0x38] sm:$0xff]
    %v141 = vld [vmem:[#allocation10] sm:$0xff]
    %v142 = vld [vmem:[#allocation10 + $0x8] sm:$0xff]
    %v143 = vld [vmem:[#allocation10 + $0x10] sm:$0xff]
    %v144 = vld [vmem:[#allocation10 + $0x18] sm:$0xff]
    %v145 = vld [vmem:[#allocation10 + $0x20] sm:$0xff]
    %v146 = vld [vmem:[#allocation10 + $0x28] sm:$0xff]
    %v147 = vld [vmem:[#allocation10 + $0x30] sm:$0xff]
    %v148 = vld [vmem:[#allocation10 + $0x38] sm:$0xff]
    %v149 = vld [vmem:[#allocation10 + $0x40] sm:$0xff]
    %v150 = vld [vmem:[#allocation10 + $0x48] sm:$0xff]
    %v151 = vld [vmem:[#allocation10 + $0x50] sm:$0xff]
    %v152 = vld [vmem:[#allocation10 + $0x58] sm:$0xff]
    %v153 = vld [vmem:[#allocation10 + $0x60] sm:$0xff]
    %v154 = vld [vmem:[#allocation10 + $0x68] sm:$0xff]
    %v155 = vld [vmem:[#allocation10 + $0x70] sm:$0xff]
    %v156 = vld [vmem:[#allocation10 + $0x78] sm:$0xff]
    %v157 = vld [vmem:[#allocation11] sm:$0xff]
    %v158 = vld [vmem:[#allocation11 + $0x8] sm:$0xff]
    %v159 = vld [vmem:[#allocation11 + $0x10] sm:$0xff]
    %v160 = vld [vmem:[#allocation11 + $0x18] sm:$0xff]
    %v161 = vld [vmem:[#allocation11 + $0x20] sm:$0xff]
    %v162 = vld [vmem:[#allocation11 + $0x28] sm:$0xff]
    %v163 = vld [vmem:[#allocation11 + $0x30] sm:$0xff]
    %v164 = vld [vmem:[#allocation11 + $0x38] sm:$0xff]
    %v165 = vld [vmem:[#allocation11 + $0x40] sm:$0xff]
    %v166 = vld [vmem:[#allocation11 + $0x48] sm:$0xff]
    %v167 = vld [vmem:[#allocation11 + $0x50] sm:$0xff]
    %v168 = vld [vmem:[#allocation11 + $0x58] sm:$0xff]
    %v169 = vld [vmem:[#allocation11 + $0x60] sm:$0xff]
    %v170 = vld [vmem:[#allocation11 + $0x68] sm:$0xff]
    %v171 = vld [vmem:[#allocation11 + $0x70] sm:$0xff]
    %v172 = vld [vmem:[#allocation11 + $0x78] sm:$0xff]
    %v173 = vld [vmem:[#allocation13] sm:$0xff]
    %v174 = vld [vmem:[#allocation13 + $0x8] sm:$0xff]
    %v175 = vld [vmem:[#allocation13 + $0x10] sm:$0xff]
    %v176 = vld [vmem:[#allocation13 + $0x18] sm:$0xff]
    %v177 = vld [vmem:[#allocation13 + $0x20] sm:$0xff]
    %v178 = vld [vmem:[#allocation13 + $0x28] sm:$0xff]
    %v179 = vld [vmem:[#allocation13 + $0x30] sm:$0xff]
    %v180 = vld [vmem:[#allocation13 + $0x38] sm:$0xff]
    %v181 = vld [vmem:[#allocation2] sm:$0xff]
    %v182 = vld [vmem:[#allocation2 + $0x8] sm:$0xff]
    %v183 = vld [vmem:[#allocation2 + $0x10] sm:$0xff]
    %v184 = vld [vmem:[#allocation2 + $0x18] sm:$0xff]
    %v185 = vld [vmem:[#allocation2 + $0x20] sm:$0xff]
    %v186 = vld [vmem:[#allocation2 + $0x28] sm:$0xff]
    %v187 = vld [vmem:[#allocation2 + $0x30] sm:$0xff]
    %v188 = vld [vmem:[#allocation2 + $0x38] sm:$0xff]
    %v189 = vld [vmem:[#allocation5] sm:$0xff]
    %v190 = vld [vmem:[#allocation5 + $0x8] sm:$0xff]
    %v191 = vld [vmem:[#allocation5 + $0x10] sm:$0xff]
    %v192 = vld [vmem:[#allocation5 + $0x18] sm:$0xff]
    %v193 = vld [vmem:[#allocation5 + $0x20] sm:$0xff]
    %v194 = vld [vmem:[#allocation5 + $0x28] sm:$0xff]
    %v195 = vld [vmem:[#allocation5 + $0x30] sm:$0xff]
    %v196 = vld [vmem:[#allocation5 + $0x38] sm:$0xff]
    %v197 = vrot.slane %v181, 1
    %v198 = vrot.slane %v182, 1
    %v199 = vrot.slane %v183, 1
    %v200 = vrot.slane %v184, 1
    %v201 = vrot.slane %v185, 1
    %v202 = vrot.slane %v186, 1
    %v203 = vrot.slane %v187, 1
    %v204 = vrot.slane %v188, 1
    %v205 = vlaneseq
    %v206 = vshrl.u32 %v205, 7
    %vm207 = vcmp.lt.s32.totalorder %v206, 7
    %v208 = vsel %vm207, %v203, %v204
    %v209 = vsel %vm207, %v202, %v203
    %v210 = vsel %vm207, %v201, %v202
    %v211 = vsel %vm207, %v200, %v201
    %v212 = vsel %vm207, %v199, %v200
    %v213 = vsel %vm207, %v198, %v199
    %v214 = vsel %vm207, %v197, %v198
    %v215 = vsel %vm207, %v204, %v197
    %v216 = vrot.slane %v181, 7
    %v217 = vrot.slane %v182, 7
    %v218 = vrot.slane %v183, 7
    %v219 = vrot.slane %v184, 7
    %v220 = vrot.slane %v185, 7
    %v221 = vrot.slane %v186, 7
    %v222 = vrot.slane %v187, 7
    %v223 = vrot.slane %v188, 7
    %vm224 = vcmp.lt.s32.totalorder %v206, 1
    %v225 = vsel %vm224, %v222, %v223
    %v226 = vsel %vm224, %v221, %v222
    %v227 = vsel %vm224, %v220, %v221
    %v228 = vsel %vm224, %v219, %v220
    %v229 = vsel %vm224, %v218, %v219
    %v230 = vsel %vm224, %v217, %v218
    %v231 = vsel %vm224, %v216, %v217
    %v232 = vsel %vm224, %v223, %v216
    %v233 = vrot.slane %v214, 1
    %v234 = vrot.slane %v213, 1
    %v235 = vrot.slane %v212, 1
    %v236 = vrot.slane %v211, 1
    %v237 = vrot.slane %v210, 1
    %v238 = vrot.slane %v209, 1
    %v239 = vrot.slane %v208, 1
    %v240 = vrot.slane %v215, 1
    %v241 = vsel %vm207, %v239, %v240
    %v242 = vsel %vm207, %v238, %v239
    %v243 = vsel %vm207, %v237, %v238
    %v244 = vsel %vm207, %v236, %v237
    %v245 = vsel %vm207, %v235, %v236
    %v246 = vsel %vm207, %v234, %v235
    %v247 = vsel %vm207, %v233, %v234
    %v248 = vsel %vm207, %v240, %v233
    %249 = vrot.lane.b32.xlu0 %v181, 127
    %v250 = vpop.permute.xlu0 %249
    %251 = vrot.lane.b32.xlu0 %v182, 127
    %v252 = vpop.permute.xlu0 %251
    %253 = vrot.lane.b32.xlu0 %v183, 127
    %v254 = vpop.permute.xlu0 %253
    %255 = vrot.lane.b32.xlu0 %v184, 127
    %v256 = vpop.permute.xlu0 %255
    %257 = vrot.lane.b32.xlu0 %v185, 127
    %v258 = vpop.permute.xlu0 %257
    %259 = vrot.lane.b32.xlu0 %v186, 127
    %v260 = vpop.permute.xlu0 %259
    %261 = vrot.lane.b32.xlu0 %v187, 127
    %v262 = vpop.permute.xlu0 %261
    %263 = vrot.lane.b32.xlu0 %v188, 127
    %v264 = vpop.permute.xlu0 %263
    %265 = vrot.lane.b32.xlu0 %v181, 1
    %v266 = vpop.permute.xlu0 %265
    %267 = vrot.lane.b32.xlu0 %v182, 1
    %v268 = vpop.permute.xlu0 %267
    %269 = vrot.lane.b32.xlu0 %v183, 1
    %v270 = vpop.permute.xlu0 %269
    %271 = vrot.lane.b32.xlu0 %v184, 1
    %v272 = vpop.permute.xlu0 %271
    %273 = vrot.lane.b32.xlu0 %v185, 1
    %v274 = vpop.permute.xlu0 %273
    %275 = vrot.lane.b32.xlu0 %v186, 1
    %v276 = vpop.permute.xlu0 %275
    %277 = vrot.lane.b32.xlu0 %v187, 1
    %v278 = vpop.permute.xlu0 %277
    %279 = vrot.lane.b32.xlu0 %v188, 1
    %v280 = vpop.permute.xlu0 %279
    %281 = vrot.lane.b32.xlu0 %v250, 127
    %v282 = vpop.permute.xlu0 %281
    %283 = vrot.lane.b32.xlu0 %v252, 127
    %v284 = vpop.permute.xlu0 %283
    %285 = vrot.lane.b32.xlu0 %v254, 127
    %v286 = vpop.permute.xlu0 %285
    %287 = vrot.lane.b32.xlu0 %v256, 127
    %v288 = vpop.permute.xlu0 %287
    %289 = vrot.lane.b32.xlu0 %v258, 127
    %v290 = vpop.permute.xlu0 %289
    %291 = vrot.lane.b32.xlu0 %v260, 127
    %v292 = vpop.permute.xlu0 %291
    %293 = vrot.lane.b32.xlu0 %v262, 127
    %v294 = vpop.permute.xlu0 %293
    %295 = vrot.lane.b32.xlu0 %v264, 127
    %v296 = vpop.permute.xlu0 %295
    %v297 = vrot.slane %v189, 1
    %v298 = vrot.slane %v190, 1
    %v299 = vrot.slane %v191, 1
    %v300 = vrot.slane %v192, 1
    %v301 = vrot.slane %v193, 1
    %v302 = vrot.slane %v194, 1
    %v303 = vrot.slane %v195, 1
    %v304 = vrot.slane %v196, 1
    %v305 = vsel %vm207, %v303, %v304
    %v306 = vsel %vm207, %v302, %v303
    %v307 = vsel %vm207, %v301, %v302
    %v308 = vsel %vm207, %v300, %v301
    %v309 = vsel %vm207, %v299, %v300
    %v310 = vsel %vm207, %v298, %v299
    %v311 = vsel %vm207, %v297, %v298
    %v312 = vsel %vm207, %v304, %v297
    %v313 = vrot.slane %v189, 7
    %v314 = vrot.slane %v190, 7
    %v315 = vrot.slane %v191, 7
    %v316 = vrot.slane %v192, 7
    %v317 = vrot.slane %v193, 7
    %v318 = vrot.slane %v194, 7
    %v319 = vrot.slane %v195, 7
    %v320 = vrot.slane %v196, 7
    %v321 = vsel %vm224, %v319, %v320
    %v322 = vsel %vm224, %v318, %v319
    %v323 = vsel %vm224, %v317, %v318
    %v324 = vsel %vm224, %v316, %v317
    %v325 = vsel %vm224, %v315, %v316
    %v326 = vsel %vm224, %v314, %v315
    %v327 = vsel %vm224, %v313, %v314
    %v328 = vsel %vm224, %v320, %v313
    %v329 = vrot.slane %v311, 1
    %v330 = vrot.slane %v310, 1
    %v331 = vrot.slane %v309, 1
    %v332 = vrot.slane %v308, 1
    %v333 = vrot.slane %v307, 1
    %v334 = vrot.slane %v306, 1
    %v335 = vrot.slane %v305, 1
    %v336 = vrot.slane %v312, 1
    %v337 = vsel %vm207, %v335, %v336
    %v338 = vsel %vm207, %v334, %v335
    %v339 = vsel %vm207, %v333, %v334
    %v340 = vsel %vm207, %v332, %v333
    %v341 = vsel %vm207, %v331, %v332
    %v342 = vsel %vm207, %v330, %v331
    %v343 = vsel %vm207, %v329, %v330
    %v344 = vsel %vm207, %v336, %v329
    %345 = vrot.lane.b32.xlu0 %v189, 127
    %v346 = vpop.permute.xlu0 %345
    %347 = vrot.lane.b32.xlu0 %v190, 127
    %v348 = vpop.permute.xlu0 %347
    %349 = vrot.lane.b32.xlu0 %v191, 127
    %v350 = vpop.permute.xlu0 %349
    %351 = vrot.lane.b32.xlu0 %v192, 127
    %v352 = vpop.permute.xlu0 %351
    %353 = vrot.lane.b32.xlu0 %v193, 127
    %v354 = vpop.permute.xlu0 %353
    %355 = vrot.lane.b32.xlu0 %v194, 127
    %v356 = vpop.permute.xlu0 %355
    %357 = vrot.lane.b32.xlu0 %v195, 127
    %v358 = vpop.permute.xlu0 %357
    %359 = vrot.lane.b32.xlu0 %v196, 127
    %v360 = vpop.permute.xlu0 %359
    %361 = vrot.lane.b32.xlu0 %v189, 1
    %v362 = vpop.permute.xlu0 %361
    %363 = vrot.lane.b32.xlu0 %v190, 1
    %v364 = vpop.permute.xlu0 %363
    %365 = vrot.lane.b32.xlu0 %v191, 1
    %v366 = vpop.permute.xlu0 %365
    %367 = vrot.lane.b32.xlu0 %v192, 1
    %v368 = vpop.permute.xlu0 %367
    %369 = vrot.lane.b32.xlu0 %v193, 1
    %v370 = vpop.permute.xlu0 %369
    %371 = vrot.lane.b32.xlu0 %v194, 1
    %v372 = vpop.permute.xlu0 %371
    %373 = vrot.lane.b32.xlu0 %v195, 1
    %v374 = vpop.permute.xlu0 %373
    %375 = vrot.lane.b32.xlu0 %v196, 1
    %v376 = vpop.permute.xlu0 %375
    %377 = vrot.lane.b32.xlu0 %v346, 127
    %v378 = vpop.permute.xlu0 %377
    %379 = vrot.lane.b32.xlu0 %v348, 127
    %v380 = vpop.permute.xlu0 %379
    %381 = vrot.lane.b32.xlu0 %v350, 127
    %v382 = vpop.permute.xlu0 %381
    %383 = vrot.lane.b32.xlu0 %v352, 127
    %v384 = vpop.permute.xlu0 %383
    %385 = vrot.lane.b32.xlu0 %v354, 127
    %v386 = vpop.permute.xlu0 %385
    %387 = vrot.lane.b32.xlu0 %v356, 127
    %v388 = vpop.permute.xlu0 %387
    %389 = vrot.lane.b32.xlu0 %v358, 127
    %v390 = vpop.permute.xlu0 %389
    %391 = vrot.lane.b32.xlu0 %v360, 127
    %v392 = vpop.permute.xlu0 %391
    %v393 = vadd.f32 %v181, %v214
    %v394 = vadd.f32 %v182, %v213
    %v395 = vadd.f32 %v183, %v212
    %v396 = vadd.f32 %v184, %v211
    %v397 = vadd.f32 %v185, %v210
    %v398 = vadd.f32 %v186, %v209
    %v399 = vadd.f32 %v187, %v208
    %v400 = vadd.f32 %v188, %v215
    %v401 = vmul.f32 %v393, 0.5
    %v402 = vmul.f32 %v394, 0.5
    %v403 = vmul.f32 %v395, 0.5
    %v404 = vmul.f32 %v396, 0.5
    %v405 = vmul.f32 %v397, 0.5
    %v406 = vmul.f32 %v398, 0.5
    %v407 = vmul.f32 %v399, 0.5
    %v408 = vmul.f32 %v400, 0.5
    %v409 = vadd.f32 %v189, %v311
    %v410 = vadd.f32 %v190, %v310
    %v411 = vadd.f32 %v191, %v309
    %v412 = vadd.f32 %v192, %v308
    %v413 = vadd.f32 %v193, %v307
    %v414 = vadd.f32 %v194, %v306
    %v415 = vadd.f32 %v195, %v305
    %v416 = vadd.f32 %v196, %v312
    %v417 = vmul.f32 %v409, 0.5
    %v418 = vmul.f32 %v410, 0.5
    %v419 = vmul.f32 %v411, 0.5
    %v420 = vmul.f32 %v412, 0.5
    %v421 = vmul.f32 %v413, 0.5
    %v422 = vmul.f32 %v414, 0.5
    %v423 = vmul.f32 %v415, 0.5
    %v424 = vmul.f32 %v416, 0.5
    %v425 = vadd.f32 %v181, %v250
    %v426 = vadd.f32 %v182, %v252
    %v427 = vadd.f32 %v183, %v254
    %v428 = vadd.f32 %v184, %v256
    %v429 = vadd.f32 %v185, %v258
    %v430 = vadd.f32 %v186, %v260
    %v431 = vadd.f32 %v187, %v262
    %v432 = vadd.f32 %v188, %v264
    %v433 = vmul.f32 %v425, 0.5
    %v434 = vmul.f32 %v426, 0.5
    %v435 = vmul.f32 %v427, 0.5
    %v436 = vmul.f32 %v428, 0.5
    %v437 = vmul.f32 %v429, 0.5
    %v438 = vmul.f32 %v430, 0.5
    %v439 = vmul.f32 %v431, 0.5
    %v440 = vmul.f32 %v432, 0.5
    %v441 = vadd.f32 %v189, %v346
    %v442 = vadd.f32 %v190, %v348
    %v443 = vadd.f32 %v191, %v350
    %v444 = vadd.f32 %v192, %v352
    %v445 = vadd.f32 %v193, %v354
    %v446 = vadd.f32 %v194, %v356
    %v447 = vadd.f32 %v195, %v358
    %v448 = vadd.f32 %v196, %v360
    %v449 = vmul.f32 %v441, 0.5
    %v450 = vmul.f32 %v442, 0.5
    %v451 = vmul.f32 %v443, 0.5
    %v452 = vmul.f32 %v444, 0.5
    %v453 = vmul.f32 %v445, 0.5
    %v454 = vmul.f32 %v446, 0.5
    %v455 = vmul.f32 %v447, 0.5
    %v456 = vmul.f32 %v448, 0.5
    %vm457 = vcmp.gt.f32.partialorder %v401, 0.0
    %vm458 = vcmp.gt.f32.partialorder %v402, 0.0
    %vm459 = vcmp.gt.f32.partialorder %v403, 0.0
    %vm460 = vcmp.gt.f32.partialorder %v404, 0.0
    %vm461 = vcmp.gt.f32.partialorder %v405, 0.0
    %vm462 = vcmp.gt.f32.partialorder %v406, 0.0
    %vm463 = vcmp.gt.f32.partialorder %v407, 0.0
    %vm464 = vcmp.gt.f32.partialorder %v408, 0.0
    %v465 = vsub.f32 %v214, %v181
    %v466 = vsub.f32 %v213, %v182
    %v467 = vsub.f32 %v212, %v183
    %v468 = vsub.f32 %v211, %v184
    %v469 = vsub.f32 %v210, %v185
    %v470 = vsub.f32 %v209, %v186
    %v471 = vsub.f32 %v208, %v187
    %v472 = vsub.f32 %v215, %v188
    %v473 = vmul.f32 %v401, 0.010185916
    %v474 = vmul.f32 %v402, 0.010185916
    %v475 = vmul.f32 %v403, 0.010185916
    %v476 = vmul.f32 %v404, 0.010185916
    %v477 = vmul.f32 %v405, 0.010185916
    %v478 = vmul.f32 %v406, 0.010185916
    %v479 = vmul.f32 %v407, 0.010185916
    %v480 = vmul.f32 %v408, 0.010185916
    %v481 = vsel %vm457, %v181, %v214
    %v482 = vsel %vm458, %v182, %v213
    %v483 = vsel %vm459, %v183, %v212
    %v484 = vsel %vm460, %v184, %v211
    %v485 = vsel %vm461, %v185, %v210
    %v486 = vsel %vm462, %v186, %v209
    %v487 = vsel %vm463, %v187, %v208
    %v488 = vsel %vm464, %v188, %v215
    %v489 = vsub.f32 1.0, %v473
    %v490 = vsub.f32 1.0, %v474
    %v491 = vsub.f32 1.0, %v475
    %v492 = vsub.f32 1.0, %v476
    %v493 = vsub.f32 1.0, %v477
    %v494 = vsub.f32 1.0, %v478
    %v495 = vsub.f32 1.0, %v479
    %v496 = vsub.f32 1.0, %v480
    %v497 = vmul.f32 %v489, 0.5
    %v498 = vmul.f32 %v490, 0.5
    %v499 = vmul.f32 %v491, 0.5
    %v500 = vmul.f32 %v492, 0.5
    %v501 = vmul.f32 %v493, 0.5
    %v502 = vmul.f32 %v494, 0.5
    %v503 = vmul.f32 %v495, 0.5
    %v504 = vmul.f32 %v496, 0.5
    %v505 = vmul.f32 %v497, %v465
    %v506 = vmul.f32 %v498, %v466
    %v507 = vmul.f32 %v499, %v467
    %v508 = vmul.f32 %v500, %v468
    %v509 = vmul.f32 %v501, %v469
    %v510 = vmul.f32 %v502, %v470
    %v511 = vmul.f32 %v503, %v471
    %v512 = vmul.f32 %v504, %v472
    %v513 = vadd.f32 %v181, %v505
    %v514 = vadd.f32 %v182, %v506
    %v515 = vadd.f32 %v183, %v507
    %v516 = vadd.f32 %v184, %v508
    %v517 = vadd.f32 %v185, %v509
    %v518 = vadd.f32 %v186, %v510
    %v519 = vadd.f32 %v187, %v511
    %v520 = vadd.f32 %v188, %v512
    %v521 = vadd.f32 %v473, 1.0
    %v522 = vadd.f32 %v474, 1.0
    %v523 = vadd.f32 %v475, 1.0
    %v524 = vadd.f32 %v476, 1.0
    %v525 = vadd.f32 %v477, 1.0
    %v526 = vadd.f32 %v478, 1.0
    %v527 = vadd.f32 %v479, 1.0
    %v528 = vadd.f32 %v480, 1.0
    %v529 = vmul.f32 %v521, 0.5
    %v530 = vmul.f32 %v522, 0.5
    %v531 = vmul.f32 %v523, 0.5
    %v532 = vmul.f32 %v524, 0.5
    %v533 = vmul.f32 %v525, 0.5
    %v534 = vmul.f32 %v526, 0.5
    %v535 = vmul.f32 %v527, 0.5
    %v536 = vmul.f32 %v528, 0.5
    %v537 = vmul.f32 %v529, %v465
    %v538 = vmul.f32 %v530, %v466
    %v539 = vmul.f32 %v531, %v467
    %v540 = vmul.f32 %v532, %v468
    %v541 = vmul.f32 %v533, %v469
    %v542 = vmul.f32 %v534, %v470
    %v543 = vmul.f32 %v535, %v471
    %v544 = vmul.f32 %v536, %v472
    %v545 = vsub.f32 %v214, %v537
    %v546 = vsub.f32 %v213, %v538
    %v547 = vsub.f32 %v212, %v539
    %v548 = vsub.f32 %v211, %v540
    %v549 = vsub.f32 %v210, %v541
    %v550 = vsub.f32 %v209, %v542
    %v551 = vsub.f32 %v208, %v543
    %v552 = vsub.f32 %v215, %v544
    %v553 = vsel %vm457, %v513, %v545
    %v554 = vsel %vm458, %v514, %v546
    %v555 = vsel %vm459, %v515, %v547
    %v556 = vsel %vm460, %v516, %v548
    %v557 = vsel %vm461, %v517, %v549
    %v558 = vsel %vm462, %v518, %v550
    %v559 = vsel %vm463, %v519, %v551
    %v560 = vsel %vm464, %v520, %v552
    %v561 = vsub.f32 %v181, %v232
    %v562 = vsub.f32 %v182, %v231
    %v563 = vsub.f32 %v183, %v230
    %v564 = vsub.f32 %v184, %v229
    %v565 = vsub.f32 %v185, %v228
    %v566 = vsub.f32 %v186, %v227
    %v567 = vsub.f32 %v187, %v226
    %v568 = vsub.f32 %v188, %v225
    %v569 = vsub.f32 %v247, %v214
    %v570 = vsub.f32 %v246, %v213
    %v571 = vsub.f32 %v245, %v212
    %v572 = vsub.f32 %v244, %v211
    %v573 = vsub.f32 %v243, %v210
    %v574 = vsub.f32 %v242, %v209
    %v575 = vsub.f32 %v241, %v208
    %v576 = vsub.f32 %v248, %v215
    %v577 = vsel %vm457, %v561, %v569
    %v578 = vsel %vm458, %v562, %v570
    %v579 = vsel %vm459, %v563, %v571
    %v580 = vsel %vm460, %v564, %v572
    %v581 = vsel %vm461, %v565, %v573
    %v582 = vsel %vm462, %v566, %v574
    %v583 = vsel %vm463, %v567, %v575
    %v584 = vsel %vm464, %v568, %v576
    %v585 = vmul.f32 %v577, %v465
    %v586 = vmul.f32 %v578, %v466
    %v587 = vmul.f32 %v579, %v467
    %v588 = vmul.f32 %v580, %v468
    %v589 = vmul.f32 %v581, %v469
    %v590 = vmul.f32 %v582, %v470
    %v591 = vmul.f32 %v583, %v471
    %v592 = vmul.f32 %v584, %v472
    %vm593 = vcmp.gt.f32.partialorder %v585, 0.0
    %vm594 = vcmp.gt.f32.partialorder %v586, 0.0
    %vm595 = vcmp.gt.f32.partialorder %v587, 0.0
    %vm596 = vcmp.gt.f32.partialorder %v588, 0.0
    %vm597 = vcmp.gt.f32.partialorder %v589, 0.0
    %vm598 = vcmp.gt.f32.partialorder %v590, 0.0
    %vm599 = vcmp.gt.f32.partialorder %v591, 0.0
    %vm600 = vcmp.gt.f32.partialorder %v592, 0.0
    %v601 = vmul.f32 %v577, 2.0
    %v602 = vmul.f32 %v578, 2.0
    %v603 = vmul.f32 %v579, 2.0
    %v604 = vmul.f32 %v580, 2.0
    %v605 = vmul.f32 %v581, 2.0
    %v606 = vmul.f32 %v582, 2.0
    %v607 = vmul.f32 %v583, 2.0
    %v608 = vmul.f32 %v584, 2.0
    %v609 = vadd.f32 %v577, %v465
    %v610 = vadd.f32 %v578, %v466
    %v611 = vadd.f32 %v579, %v467
    %v612 = vadd.f32 %v580, %v468
    %v613 = vadd.f32 %v581, %v469
    %v614 = vadd.f32 %v582, %v470
    %v615 = vadd.f32 %v583, %v471
    %v616 = vadd.f32 %v584, %v472
    %v617 = vrcp.pop %v609
    %v618 = vrcp.pop %v610
    %v619 = vrcp.pop %v611
    %v620 = vrcp.pop %v612
    %v621 = vrcp.pop %v613
    %v622 = vrcp.pop %v614
    %v623 = vrcp.pop %v615
    %v624 = vrcp.pop %v616
    %v625 = vmul.f32 %v601, %v617
    %v626 = vmul.f32 %v602, %v618
    %v627 = vmul.f32 %v603, %v619
    %v628 = vmul.f32 %v604, %v620
    %v629 = vmul.f32 %v605, %v621
    %v630 = vmul.f32 %v606, %v622
    %v631 = vmul.f32 %v607, %v623
    %v632 = vmul.f32 %v608, %v624
    %v633 = vsel %vm593, %v625, 0.0
    %v634 = vsel %vm594, %v626, 0.0
    %v635 = vsel %vm595, %v627, 0.0
    %v636 = vsel %vm596, %v628, 0.0
    %v637 = vsel %vm597, %v629, 0.0
    %v638 = vsel %vm598, %v630, 0.0
    %v639 = vsel %vm599, %v631, 0.0
    %v640 = vsel %vm600, %v632, 0.0
    %v641 = vsub.f32 %v553, %v481
    %v642 = vsub.f32 %v554, %v482
    %v643 = vsub.f32 %v555, %v483
    %v644 = vsub.f32 %v556, %v484
    %v645 = vsub.f32 %v557, %v485
    %v646 = vsub.f32 %v558, %v486
    %v647 = vsub.f32 %v559, %v487
    %v648 = vsub.f32 %v560, %v488
    %v649 = vmul.f32 %v633, %v641
    %v650 = vmul.f32 %v634, %v642
    %v651 = vmul.f32 %v635, %v643
    %v652 = vmul.f32 %v636, %v644
    %v653 = vmul.f32 %v637, %v645
    %v654 = vmul.f32 %v638, %v646
    %v655 = vmul.f32 %v639, %v647
    %v656 = vmul.f32 %v640, %v648
    %v657 = vadd.f32 %v481, %v649
    %v658 = vadd.f32 %v482, %v650
    %v659 = vadd.f32 %v483, %v651
    %v660 = vadd.f32 %v484, %v652
    %v661 = vadd.f32 %v485, %v653
    %v662 = vadd.f32 %v486, %v654
    %v663 = vadd.f32 %v487, %v655
    %v664 = vadd.f32 %v488, %v656
    %v665 = vmul.f32 %v657, %v401
    %v666 = vmul.f32 %v658, %v402
    %v667 = vmul.f32 %v659, %v403
    %v668 = vmul.f32 %v660, %v404
    %v669 = vmul.f32 %v661, %v405
    %v670 = vmul.f32 %v662, %v406
    %v671 = vmul.f32 %v663, %v407
    %v672 = vmul.f32 %v664, %v408
    %v673 = vrot.slane %v665, 7
    %v674 = vrot.slane %v666, 7
    %v675 = vrot.slane %v667, 7
    %v676 = vrot.slane %v668, 7
    %v677 = vrot.slane %v669, 7
    %v678 = vrot.slane %v670, 7
    %v679 = vrot.slane %v671, 7
    %v680 = vrot.slane %v672, 7
    %v681 = vsel %vm224, %v679, %v680
    %v682 = vsel %vm224, %v678, %v679
    %v683 = vsel %vm224, %v677, %v678
    %v684 = vsel %vm224, %v676, %v677
    %v685 = vsel %vm224, %v675, %v676
    %v686 = vsel %vm224, %v674, %v675
    %v687 = vsel %vm224, %v673, %v674
    %v688 = vsel %vm224, %v680, %v673
    %v689 = vsub.f32 %v665, %v688
    %v690 = vsub.f32 %v666, %v687
    %v691 = vsub.f32 %v667, %v686
    %v692 = vsub.f32 %v668, %v685
    %v693 = vsub.f32 %v669, %v684
    %v694 = vsub.f32 %v670, %v683
    %v695 = vsub.f32 %v671, %v682
    %v696 = vsub.f32 %v672, %v681
    %v697 = vmul.f32 %v689, 10.185916
    %v698 = vmul.f32 %v690, 10.185916
    %v699 = vmul.f32 %v691, 10.185916
    %v700 = vmul.f32 %v692, 10.185916
    %v701 = vmul.f32 %v693, 10.185916
    %v702 = vmul.f32 %v694, 10.185916
    %v703 = vmul.f32 %v695, 10.185916
    %v704 = vmul.f32 %v696, 10.185916
    %vm705 = vcmp.gt.f32.partialorder %v417, 0.0
    %vm706 = vcmp.gt.f32.partialorder %v418, 0.0
    %vm707 = vcmp.gt.f32.partialorder %v419, 0.0
    %vm708 = vcmp.gt.f32.partialorder %v420, 0.0
    %vm709 = vcmp.gt.f32.partialorder %v421, 0.0
    %vm710 = vcmp.gt.f32.partialorder %v422, 0.0
    %vm711 = vcmp.gt.f32.partialorder %v423, 0.0
    %vm712 = vcmp.gt.f32.partialorder %v424, 0.0
    %v713 = vsub.f32 %v250, %v181
    %v714 = vsub.f32 %v252, %v182
    %v715 = vsub.f32 %v254, %v183
    %v716 = vsub.f32 %v256, %v184
    %v717 = vsub.f32 %v258, %v185
    %v718 = vsub.f32 %v260, %v186
    %v719 = vsub.f32 %v262, %v187
    %v720 = vsub.f32 %v264, %v188
    %v721 = vmul.f32 %v417, 0.020371832
    %v722 = vmul.f32 %v418, 0.020371832
    %v723 = vmul.f32 %v419, 0.020371832
    %v724 = vmul.f32 %v420, 0.020371832
    %v725 = vmul.f32 %v421, 0.020371832
    %v726 = vmul.f32 %v422, 0.020371832
    %v727 = vmul.f32 %v423, 0.020371832
    %v728 = vmul.f32 %v424, 0.020371832
    %v729 = vsel %vm705, %v181, %v250
    %v730 = vsel %vm706, %v182, %v252
    %v731 = vsel %vm707, %v183, %v254
    %v732 = vsel %vm708, %v184, %v256
    %v733 = vsel %vm709, %v185, %v258
    %v734 = vsel %vm710, %v186, %v260
    %v735 = vsel %vm711, %v187, %v262
    %v736 = vsel %vm712, %v188, %v264
    %v737 = vsub.f32 1.0, %v721
    %v738 = vsub.f32 1.0, %v722
    %v739 = vsub.f32 1.0, %v723
    %v740 = vsub.f32 1.0, %v724
    %v741 = vsub.f32 1.0, %v725
    %v742 = vsub.f32 1.0, %v726
    %v743 = vsub.f32 1.0, %v727
    %v744 = vsub.f32 1.0, %v728
    %v745 = vmul.f32 %v737, 0.5
    %v746 = vmul.f32 %v738, 0.5
    %v747 = vmul.f32 %v739, 0.5
    %v748 = vmul.f32 %v740, 0.5
    %v749 = vmul.f32 %v741, 0.5
    %v750 = vmul.f32 %v742, 0.5
    %v751 = vmul.f32 %v743, 0.5
    %v752 = vmul.f32 %v744, 0.5
    %v753 = vmul.f32 %v745, %v713
    %v754 = vmul.f32 %v746, %v714
    %v755 = vmul.f32 %v747, %v715
    %v756 = vmul.f32 %v748, %v716
    %v757 = vmul.f32 %v749, %v717
    %v758 = vmul.f32 %v750, %v718
    %v759 = vmul.f32 %v751, %v719
    %v760 = vmul.f32 %v752, %v720
    %v761 = vadd.f32 %v181, %v753
    %v762 = vadd.f32 %v182, %v754
    %v763 = vadd.f32 %v183, %v755
    %v764 = vadd.f32 %v184, %v756
    %v765 = vadd.f32 %v185, %v757
    %v766 = vadd.f32 %v186, %v758
    %v767 = vadd.f32 %v187, %v759
    %v768 = vadd.f32 %v188, %v760
    %v769 = vadd.f32 %v721, 1.0
    %v770 = vadd.f32 %v722, 1.0
    %v771 = vadd.f32 %v723, 1.0
    %v772 = vadd.f32 %v724, 1.0
    %v773 = vadd.f32 %v725, 1.0
    %v774 = vadd.f32 %v726, 1.0
    %v775 = vadd.f32 %v727, 1.0
    %v776 = vadd.f32 %v728, 1.0
    %v777 = vmul.f32 %v769, 0.5
    %v778 = vmul.f32 %v770, 0.5
    %v779 = vmul.f32 %v771, 0.5
    %v780 = vmul.f32 %v772, 0.5
    %v781 = vmul.f32 %v773, 0.5
    %v782 = vmul.f32 %v774, 0.5
    %v783 = vmul.f32 %v775, 0.5
    %v784 = vmul.f32 %v776, 0.5
    %v785 = vmul.f32 %v777, %v713
    %v786 = vmul.f32 %v778, %v714
    %v787 = vmul.f32 %v779, %v715
    %v788 = vmul.f32 %v780, %v716
    %v789 = vmul.f32 %v781, %v717
    %v790 = vmul.f32 %v782, %v718
    %v791 = vmul.f32 %v783, %v719
    %v792 = vmul.f32 %v784, %v720
    %v793 = vsub.f32 %v250, %v785
    %v794 = vsub.f32 %v252, %v786
    %v795 = vsub.f32 %v254, %v787
    %v796 = vsub.f32 %v256, %v788
    %v797 = vsub.f32 %v258, %v789
    %v798 = vsub.f32 %v260, %v790
    %v799 = vsub.f32 %v262, %v791
    %v800 = vsub.f32 %v264, %v792
    %v801 = vsel %vm705, %v761, %v793
    %v802 = vsel %vm706, %v762, %v794
    %v803 = vsel %vm707, %v763, %v795
    %v804 = vsel %vm708, %v764, %v796
    %v805 = vsel %vm709, %v765, %v797
    %v806 = vsel %vm710, %v766, %v798
    %v807 = vsel %vm711, %v767, %v799
    %v808 = vsel %vm712, %v768, %v800
    %v809 = vsub.f32 %v181, %v266
    %v810 = vsub.f32 %v182, %v268
    %v811 = vsub.f32 %v183, %v270
    %v812 = vsub.f32 %v184, %v272
    %v813 = vsub.f32 %v185, %v274
    %v814 = vsub.f32 %v186, %v276
    %v815 = vsub.f32 %v187, %v278
    %v816 = vsub.f32 %v188, %v280
    %v817 = vsub.f32 %v282, %v250
    %v818 = vsub.f32 %v284, %v252
    %v819 = vsub.f32 %v286, %v254
    %v820 = vsub.f32 %v288, %v256
    %v821 = vsub.f32 %v290, %v258
    %v822 = vsub.f32 %v292, %v260
    %v823 = vsub.f32 %v294, %v262
    %v824 = vsub.f32 %v296, %v264
    %v825 = vsel %vm705, %v809, %v817
    %v826 = vsel %vm706, %v810, %v818
    %v827 = vsel %vm707, %v811, %v819
    %v828 = vsel %vm708, %v812, %v820
    %v829 = vsel %vm709, %v813, %v821
    %v830 = vsel %vm710, %v814, %v822
    %v831 = vsel %vm711, %v815, %v823
    %v832 = vsel %vm712, %v816, %v824
    %v833 = vmul.f32 %v825, %v713
    %v834 = vmul.f32 %v826, %v714
    %v835 = vmul.f32 %v827, %v715
    %v836 = vmul.f32 %v828, %v716
    %v837 = vmul.f32 %v829, %v717
    %v838 = vmul.f32 %v830, %v718
    %v839 = vmul.f32 %v831, %v719
    %v840 = vmul.f32 %v832, %v720
    %vm841 = vcmp.gt.f32.partialorder %v833, 0.0
    %vm842 = vcmp.gt.f32.partialorder %v834, 0.0
    %vm843 = vcmp.gt.f32.partialorder %v835, 0.0
    %vm844 = vcmp.gt.f32.partialorder %v836, 0.0
    %vm845 = vcmp.gt.f32.partialorder %v837, 0.0
    %vm846 = vcmp.gt.f32.partialorder %v838, 0.0
    %vm847 = vcmp.gt.f32.partialorder %v839, 0.0
    %vm848 = vcmp.gt.f32.partialorder %v840, 0.0
    %v849 = vmul.f32 %v825, 2.0
    %v850 = vmul.f32 %v826, 2.0
    %v851 = vmul.f32 %v827, 2.0
    %v852 = vmul.f32 %v828, 2.0
    %v853 = vmul.f32 %v829, 2.0
    %v854 = vmul.f32 %v830, 2.0
    %v855 = vmul.f32 %v831, 2.0
    %v856 = vmul.f32 %v832, 2.0
    %v857 = vadd.f32 %v825, %v713
    %v858 = vadd.f32 %v826, %v714
    %v859 = vadd.f32 %v827, %v715
    %v860 = vadd.f32 %v828, %v716
    %v861 = vadd.f32 %v829, %v717
    %v862 = vadd.f32 %v830, %v718
    %v863 = vadd.f32 %v831, %v719
    %v864 = vadd.f32 %v832, %v720
    %v865 = vrcp.pop %v857
    %v866 = vrcp.pop %v858
    %v867 = vrcp.pop %v859
    %v868 = vrcp.pop %v860
    %v869 = vrcp.pop %v861
    %v870 = vrcp.pop %v862
    %v871 = vrcp.pop %v863
    %v872 = vrcp.pop %v864
    %v873 = vmul.f32 %v849, %v865
    %v874 = vmul.f32 %v850, %v866
    %v875 = vmul.f32 %v851, %v867
    %v876 = vmul.f32 %v852, %v868
    %v877 = vmul.f32 %v853, %v869
    %v878 = vmul.f32 %v854, %v870
    %v879 = vmul.f32 %v855, %v871
    %v880 = vmul.f32 %v856, %v872
    %v881 = vsel %vm841, %v873, 0.0
    %v882 = vsel %vm842, %v874, 0.0
    %v883 = vsel %vm843, %v875, 0.0
    %v884 = vsel %vm844, %v876, 0.0
    %v885 = vsel %vm845, %v877, 0.0
    %v886 = vsel %vm846, %v878, 0.0
    %v887 = vsel %vm847, %v879, 0.0
    %v888 = vsel %vm848, %v880, 0.0
    %v889 = vsub.f32 %v801, %v729
    %v890 = vsub.f32 %v802, %v730
    %v891 = vsub.f32 %v803, %v731
    %v892 = vsub.f32 %v804, %v732
    %v893 = vsub.f32 %v805, %v733
    %v894 = vsub.f32 %v806, %v734
    %v895 = vsub.f32 %v807, %v735
    %v896 = vsub.f32 %v808, %v736
    %v897 = vmul.f32 %v881, %v889
    %v898 = vmul.f32 %v882, %v890
    %v899 = vmul.f32 %v883, %v891
    %v900 = vmul.f32 %v884, %v892
    %v901 = vmul.f32 %v885, %v893
    %v902 = vmul.f32 %v886, %v894
    %v903 = vmul.f32 %v887, %v895
    %v904 = vmul.f32 %v888, %v896
    %v905 = vadd.f32 %v729, %v897
    %v906 = vadd.f32 %v730, %v898
    %v907 = vadd.f32 %v731, %v899
    %v908 = vadd.f32 %v732, %v900
    %v909 = vadd.f32 %v733, %v901
    %v910 = vadd.f32 %v734, %v902
    %v911 = vadd.f32 %v735, %v903
    %v912 = vadd.f32 %v736, %v904
    %v913 = vmul.f32 %v905, %v417
    %v914 = vmul.f32 %v906, %v418
    %v915 = vmul.f32 %v907, %v419
    %v916 = vmul.f32 %v908, %v420
    %v917 = vmul.f32 %v909, %v421
    %v918 = vmul.f32 %v910, %v422
    %v919 = vmul.f32 %v911, %v423
    %v920 = vmul.f32 %v912, %v424
    %921 = vrot.lane.b32.xlu0 %v913, 1
    %v922 = vpop.permute.xlu0 %921
    %923 = vrot.lane.b32.xlu0 %v914, 1
    %v924 = vpop.permute.xlu0 %923
    %925 = vrot.lane.b32.xlu0 %v915, 1
    %v926 = vpop.permute.xlu0 %925
    %927 = vrot.lane.b32.xlu0 %v916, 1
    %v928 = vpop.permute.xlu0 %927
    %929 = vrot.lane.b32.xlu0 %v917, 1
    %v930 = vpop.permute.xlu0 %929
    %931 = vrot.lane.b32.xlu0 %v918, 1
    %v932 = vpop.permute.xlu0 %931
    %933 = vrot.lane.b32.xlu0 %v919, 1
    %v934 = vpop.permute.xlu0 %933
    %935 = vrot.lane.b32.xlu0 %v920, 1
    %v936 = vpop.permute.xlu0 %935
    %v937 = vsub.f32 %v913, %v922
    %v938 = vsub.f32 %v914, %v924
    %v939 = vsub.f32 %v915, %v926
    %v940 = vsub.f32 %v916, %v928
    %v941 = vsub.f32 %v917, %v930
    %v942 = vsub.f32 %v918, %v932
    %v943 = vsub.f32 %v919, %v934
    %v944 = vsub.f32 %v920, %v936
    %v945 = vmul.f32 %v937, 20.371832
    %v946 = vmul.f32 %v938, 20.371832
    %v947 = vmul.f32 %v939, 20.371832
    %v948 = vmul.f32 %v940, 20.371832
    %v949 = vmul.f32 %v941, 20.371832
    %v950 = vmul.f32 %v942, 20.371832
    %v951 = vmul.f32 %v943, 20.371832
    %v952 = vmul.f32 %v944, 20.371832
    %v953 = vadd.f32 %v697, %v945
    %v954 = vadd.f32 %v698, %v946
    %v955 = vadd.f32 %v699, %v947
    %v956 = vadd.f32 %v700, %v948
    %v957 = vadd.f32 %v701, %v949
    %v958 = vadd.f32 %v702, %v950
    %v959 = vadd.f32 %v703, %v951
    %v960 = vadd.f32 %v704, %v952
    %v961 = vadd.f32 %v214, %v232
    %v962 = vadd.f32 %v213, %v231
    %v963 = vadd.f32 %v212, %v230
    %v964 = vadd.f32 %v211, %v229
    %v965 = vadd.f32 %v210, %v228
    %v966 = vadd.f32 %v209, %v227
    %v967 = vadd.f32 %v208, %v226
    %v968 = vadd.f32 %v215, %v225
    %v969 = vmul.f32 %v181, 2.0
    %v970 = vmul.f32 %v182, 2.0
    %v971 = vmul.f32 %v183, 2.0
    %v972 = vmul.f32 %v184, 2.0
    %v973 = vmul.f32 %v185, 2.0
    %v974 = vmul.f32 %v186, 2.0
    %v975 = vmul.f32 %v187, 2.0
    %v976 = vmul.f32 %v188, 2.0
    %v977 = vsub.f32 %v961, %v969
    %v978 = vsub.f32 %v962, %v970
    %v979 = vsub.f32 %v963, %v971
    %v980 = vsub.f32 %v964, %v972
    %v981 = vsub.f32 %v965, %v973
    %v982 = vsub.f32 %v966, %v974
    %v983 = vsub.f32 %v967, %v975
    %v984 = vsub.f32 %v968, %v976
    %v985 = vmul.f32 %v977, 103.75289
    %v986 = vmul.f32 %v978, 103.75289
    %v987 = vmul.f32 %v979, 103.75289
    %v988 = vmul.f32 %v980, 103.75289
    %v989 = vmul.f32 %v981, 103.75289
    %v990 = vmul.f32 %v982, 103.75289
    %v991 = vmul.f32 %v983, 103.75289
    %v992 = vmul.f32 %v984, 103.75289
    %v993 = vadd.f32 %v250, %v266
    %v994 = vadd.f32 %v252, %v268
    %v995 = vadd.f32 %v254, %v270
    %v996 = vadd.f32 %v256, %v272
    %v997 = vadd.f32 %v258, %v274
    %v998 = vadd.f32 %v260, %v276
    %v999 = vadd.f32 %v262, %v278
    %v1000 = vadd.f32 %v264, %v280
    %v1001 = vsub.f32 %v993, %v969
    %v1002 = vsub.f32 %v994, %v970
    %v1003 = vsub.f32 %v995, %v971
    %v1004 = vsub.f32 %v996, %v972
    %v1005 = vsub.f32 %v997, %v973
    %v1006 = vsub.f32 %v998, %v974
    %v1007 = vsub.f32 %v999, %v975
    %v1008 = vsub.f32 %v1000, %v976
    %v1009 = vmul.f32 %v1001, 415.01157
    %v1010 = vmul.f32 %v1002, 415.01157
    %v1011 = vmul.f32 %v1003, 415.01157
    %v1012 = vmul.f32 %v1004, 415.01157
    %v1013 = vmul.f32 %v1005, 415.01157
    %v1014 = vmul.f32 %v1006, 415.01157
    %v1015 = vmul.f32 %v1007, 415.01157
    %v1016 = vmul.f32 %v1008, 415.01157
    %v1017 = vadd.f32 %v985, %v1009
    %v1018 = vadd.f32 %v986, %v1010
    %v1019 = vadd.f32 %v987, %v1011
    %v1020 = vadd.f32 %v988, %v1012
    %v1021 = vadd.f32 %v989, %v1013
    %v1022 = vadd.f32 %v990, %v1014
    %v1023 = vadd.f32 %v991, %v1015
    %v1024 = vadd.f32 %v992, %v1016
    %v1025 = vmul.f32 %v1017, 0.001
    %v1026 = vmul.f32 %v1018, 0.001
    %v1027 = vmul.f32 %v1019, 0.001
    %v1028 = vmul.f32 %v1020, 0.001
    %v1029 = vmul.f32 %v1021, 0.001
    %v1030 = vmul.f32 %v1022, 0.001
    %v1031 = vmul.f32 %v1023, 0.001
    %v1032 = vmul.f32 %v1024, 0.001
    %v1033 = vsub.f32 %v1025, %v953
    %v1034 = vsub.f32 %v1026, %v954
    %v1035 = vsub.f32 %v1027, %v955
    %v1036 = vsub.f32 %v1028, %v956
    %v1037 = vsub.f32 %v1029, %v957
    %v1038 = vsub.f32 %v1030, %v958
    %v1039 = vsub.f32 %v1031, %v959
    %v1040 = vsub.f32 %v1032, %v960
    %vm1041 = vcmp.gt.f32.partialorder %v433, 0.0
    %vm1042 = vcmp.gt.f32.partialorder %v434, 0.0
    %vm1043 = vcmp.gt.f32.partialorder %v435, 0.0
    %vm1044 = vcmp.gt.f32.partialorder %v436, 0.0
    %vm1045 = vcmp.gt.f32.partialorder %v437, 0.0
    %vm1046 = vcmp.gt.f32.partialorder %v438, 0.0
    %vm1047 = vcmp.gt.f32.partialorder %v439, 0.0
    %vm1048 = vcmp.gt.f32.partialorder %v440, 0.0
    %v1049 = vsub.f32 %v311, %v189
    %v1050 = vsub.f32 %v310, %v190
    %v1051 = vsub.f32 %v309, %v191
    %v1052 = vsub.f32 %v308, %v192
    %v1053 = vsub.f32 %v307, %v193
    %v1054 = vsub.f32 %v306, %v194
    %v1055 = vsub.f32 %v305, %v195
    %v1056 = vsub.f32 %v312, %v196
    %v1057 = vmul.f32 %v433, 0.010185916
    %v1058 = vmul.f32 %v434, 0.010185916
    %v1059 = vmul.f32 %v435, 0.010185916
    %v1060 = vmul.f32 %v436, 0.010185916
    %v1061 = vmul.f32 %v437, 0.010185916
    %v1062 = vmul.f32 %v438, 0.010185916
    %v1063 = vmul.f32 %v439, 0.010185916
    %v1064 = vmul.f32 %v440, 0.010185916
    %v1065 = vsel %vm1041, %v189, %v311
    %v1066 = vsel %vm1042, %v190, %v310
    %v1067 = vsel %vm1043, %v191, %v309
    %v1068 = vsel %vm1044, %v192, %v308
    %v1069 = vsel %vm1045, %v193, %v307
    %v1070 = vsel %vm1046, %v194, %v306
    %v1071 = vsel %vm1047, %v195, %v305
    %v1072 = vsel %vm1048, %v196, %v312
    %v1073 = vsub.f32 1.0, %v1057
    %v1074 = vsub.f32 1.0, %v1058
    %v1075 = vsub.f32 1.0, %v1059
    %v1076 = vsub.f32 1.0, %v1060
    %v1077 = vsub.f32 1.0, %v1061
    %v1078 = vsub.f32 1.0, %v1062
    %v1079 = vsub.f32 1.0, %v1063
    %v1080 = vsub.f32 1.0, %v1064
    %v1081 = vmul.f32 %v1073, 0.5
    %v1082 = vmul.f32 %v1074, 0.5
    %v1083 = vmul.f32 %v1075, 0.5
    %v1084 = vmul.f32 %v1076, 0.5
    %v1085 = vmul.f32 %v1077, 0.5
    %v1086 = vmul.f32 %v1078, 0.5
    %v1087 = vmul.f32 %v1079, 0.5
    %v1088 = vmul.f32 %v1080, 0.5
    %v1089 = vmul.f32 %v1081, %v1049
    %v1090 = vmul.f32 %v1082, %v1050
    %v1091 = vmul.f32 %v1083, %v1051
    %v1092 = vmul.f32 %v1084, %v1052
    %v1093 = vmul.f32 %v1085, %v1053
    %v1094 = vmul.f32 %v1086, %v1054
    %v1095 = vmul.f32 %v1087, %v1055
    %v1096 = vmul.f32 %v1088, %v1056
    %v1097 = vadd.f32 %v189, %v1089
    %v1098 = vadd.f32 %v190, %v1090
    %v1099 = vadd.f32 %v191, %v1091
    %v1100 = vadd.f32 %v192, %v1092
    %v1101 = vadd.f32 %v193, %v1093
    %v1102 = vadd.f32 %v194, %v1094
    %v1103 = vadd.f32 %v195, %v1095
    %v1104 = vadd.f32 %v196, %v1096
    %v1105 = vadd.f32 %v1057, 1.0
    %v1106 = vadd.f32 %v1058, 1.0
    %v1107 = vadd.f32 %v1059, 1.0
    %v1108 = vadd.f32 %v1060, 1.0
    %v1109 = vadd.f32 %v1061, 1.0
    %v1110 = vadd.f32 %v1062, 1.0
    %v1111 = vadd.f32 %v1063, 1.0
    %v1112 = vadd.f32 %v1064, 1.0
    %v1113 = vmul.f32 %v1105, 0.5
    %v1114 = vmul.f32 %v1106, 0.5
    %v1115 = vmul.f32 %v1107, 0.5
    %v1116 = vmul.f32 %v1108, 0.5
    %v1117 = vmul.f32 %v1109, 0.5
    %v1118 = vmul.f32 %v1110, 0.5
    %v1119 = vmul.f32 %v1111, 0.5
    %v1120 = vmul.f32 %v1112, 0.5
    %v1121 = vmul.f32 %v1113, %v1049
    %v1122 = vmul.f32 %v1114, %v1050
    %v1123 = vmul.f32 %v1115, %v1051
    %v1124 = vmul.f32 %v1116, %v1052
    %v1125 = vmul.f32 %v1117, %v1053
    %v1126 = vmul.f32 %v1118, %v1054
    %v1127 = vmul.f32 %v1119, %v1055
    %v1128 = vmul.f32 %v1120, %v1056
    %v1129 = vsub.f32 %v311, %v1121
    %v1130 = vsub.f32 %v310, %v1122
    %v1131 = vsub.f32 %v309, %v1123
    %v1132 = vsub.f32 %v308, %v1124
    %v1133 = vsub.f32 %v307, %v1125
    %v1134 = vsub.f32 %v306, %v1126
    %v1135 = vsub.f32 %v305, %v1127
    %v1136 = vsub.f32 %v312, %v1128
    %v1137 = vsel %vm1041, %v1097, %v1129
    %v1138 = vsel %vm1042, %v1098, %v1130
    %v1139 = vsel %vm1043, %v1099, %v1131
    %v1140 = vsel %vm1044, %v1100, %v1132
    %v1141 = vsel %vm1045, %v1101, %v1133
    %v1142 = vsel %vm1046, %v1102, %v1134
    %v1143 = vsel %vm1047, %v1103, %v1135
    %v1144 = vsel %vm1048, %v1104, %v1136
    %v1145 = vsub.f32 %v189, %v328
    %v1146 = vsub.f32 %v190, %v327
    %v1147 = vsub.f32 %v191, %v326
    %v1148 = vsub.f32 %v192, %v325
    %v1149 = vsub.f32 %v193, %v324
    %v1150 = vsub.f32 %v194, %v323
    %v1151 = vsub.f32 %v195, %v322
    %v1152 = vsub.f32 %v196, %v321
    %v1153 = vsub.f32 %v343, %v311
    %v1154 = vsub.f32 %v342, %v310
    %v1155 = vsub.f32 %v341, %v309
    %v1156 = vsub.f32 %v340, %v308
    %v1157 = vsub.f32 %v339, %v307
    %v1158 = vsub.f32 %v338, %v306
    %v1159 = vsub.f32 %v337, %v305
    %v1160 = vsub.f32 %v344, %v312
    %v1161 = vsel %vm1041, %v1145, %v1153
    %v1162 = vsel %vm1042, %v1146, %v1154
    %v1163 = vsel %vm1043, %v1147, %v1155
    %v1164 = vsel %vm1044, %v1148, %v1156
    %v1165 = vsel %vm1045, %v1149, %v1157
    %v1166 = vsel %vm1046, %v1150, %v1158
    %v1167 = vsel %vm1047, %v1151, %v1159
    %v1168 = vsel %vm1048, %v1152, %v1160
    %v1169 = vmul.f32 %v1161, %v1049
    %v1170 = vmul.f32 %v1162, %v1050
    %v1171 = vmul.f32 %v1163, %v1051
    %v1172 = vmul.f32 %v1164, %v1052
    %v1173 = vmul.f32 %v1165, %v1053
    %v1174 = vmul.f32 %v1166, %v1054
    %v1175 = vmul.f32 %v1167, %v1055
    %v1176 = vmul.f32 %v1168, %v1056
    %vm1177 = vcmp.gt.f32.partialorder %v1169, 0.0
    %vm1178 = vcmp.gt.f32.partialorder %v1170, 0.0
    %vm1179 = vcmp.gt.f32.partialorder %v1171, 0.0
    %vm1180 = vcmp.gt.f32.partialorder %v1172, 0.0
    %vm1181 = vcmp.gt.f32.partialorder %v1173, 0.0
    %vm1182 = vcmp.gt.f32.partialorder %v1174, 0.0
    %vm1183 = vcmp.gt.f32.partialorder %v1175, 0.0
    %vm1184 = vcmp.gt.f32.partialorder %v1176, 0.0
    %v1185 = vmul.f32 %v1161, 2.0
    %v1186 = vmul.f32 %v1162, 2.0
    %v1187 = vmul.f32 %v1163, 2.0
    %v1188 = vmul.f32 %v1164, 2.0
    %v1189 = vmul.f32 %v1165, 2.0
    %v1190 = vmul.f32 %v1166, 2.0
    %v1191 = vmul.f32 %v1167, 2.0
    %v1192 = vmul.f32 %v1168, 2.0
    %v1193 = vadd.f32 %v1161, %v1049
    %v1194 = vadd.f32 %v1162, %v1050
    %v1195 = vadd.f32 %v1163, %v1051
    %v1196 = vadd.f32 %v1164, %v1052
    %v1197 = vadd.f32 %v1165, %v1053
    %v1198 = vadd.f32 %v1166, %v1054
    %v1199 = vadd.f32 %v1167, %v1055
    %v1200 = vadd.f32 %v1168, %v1056
    %v1201 = vrcp.pop %v1193
    %v1202 = vrcp.pop %v1194
    %v1203 = vrcp.pop %v1195
    %v1204 = vrcp.pop %v1196
    %v1205 = vrcp.pop %v1197
    %v1206 = vrcp.pop %v1198
    %v1207 = vrcp.pop %v1199
    %v1208 = vrcp.pop %v1200
    %v1209 = vmul.f32 %v1185, %v1201
    %v1210 = vmul.f32 %v1186, %v1202
    %v1211 = vmul.f32 %v1187, %v1203
    %v1212 = vmul.f32 %v1188, %v1204
    %v1213 = vmul.f32 %v1189, %v1205
    %v1214 = vmul.f32 %v1190, %v1206
    %v1215 = vmul.f32 %v1191, %v1207
    %v1216 = vmul.f32 %v1192, %v1208
    %v1217 = vsel %vm1177, %v1209, 0.0
    %v1218 = vsel %vm1178, %v1210, 0.0
    %v1219 = vsel %vm1179, %v1211, 0.0
    %v1220 = vsel %vm1180, %v1212, 0.0
    %v1221 = vsel %vm1181, %v1213, 0.0
    %v1222 = vsel %vm1182, %v1214, 0.0
    %v1223 = vsel %vm1183, %v1215, 0.0
    %v1224 = vsel %vm1184, %v1216, 0.0
    %v1225 = vsub.f32 %v1137, %v1065
    %v1226 = vsub.f32 %v1138, %v1066
    %v1227 = vsub.f32 %v1139, %v1067
    %v1228 = vsub.f32 %v1140, %v1068
    %v1229 = vsub.f32 %v1141, %v1069
    %v1230 = vsub.f32 %v1142, %v1070
    %v1231 = vsub.f32 %v1143, %v1071
    %v1232 = vsub.f32 %v1144, %v1072
    %v1233 = vmul.f32 %v1217, %v1225
    %v1234 = vmul.f32 %v1218, %v1226
    %v1235 = vmul.f32 %v1219, %v1227
    %v1236 = vmul.f32 %v1220, %v1228
    %v1237 = vmul.f32 %v1221, %v1229
    %v1238 = vmul.f32 %v1222, %v1230
    %v1239 = vmul.f32 %v1223, %v1231
    %v1240 = vmul.f32 %v1224, %v1232
    %v1241 = vadd.f32 %v1065, %v1233
    %v1242 = vadd.f32 %v1066, %v1234
    %v1243 = vadd.f32 %v1067, %v1235
    %v1244 = vadd.f32 %v1068, %v1236
    %v1245 = vadd.f32 %v1069, %v1237
    %v1246 = vadd.f32 %v1070, %v1238
    %v1247 = vadd.f32 %v1071, %v1239
    %v1248 = vadd.f32 %v1072, %v1240
    %v1249 = vmul.f32 %v1241, %v433
    %v1250 = vmul.f32 %v1242, %v434
    %v1251 = vmul.f32 %v1243, %v435
    %v1252 = vmul.f32 %v1244, %v436
    %v1253 = vmul.f32 %v1245, %v437
    %v1254 = vmul.f32 %v1246, %v438
    %v1255 = vmul.f32 %v1247, %v439
    %v1256 = vmul.f32 %v1248, %v440
    %v1257 = vrot.slane %v1249, 7
    %v1258 = vrot.slane %v1250, 7
    %v1259 = vrot.slane %v1251, 7
    %v1260 = vrot.slane %v1252, 7
    %v1261 = vrot.slane %v1253, 7
    %v1262 = vrot.slane %v1254, 7
    %v1263 = vrot.slane %v1255, 7
    %v1264 = vrot.slane %v1256, 7
    %v1265 = vsel %vm224, %v1263, %v1264
    %v1266 = vsel %vm224, %v1262, %v1263
    %v1267 = vsel %vm224, %v1261, %v1262
    %v1268 = vsel %vm224, %v1260, %v1261
    %v1269 = vsel %vm224, %v1259, %v1260
    %v1270 = vsel %vm224, %v1258, %v1259
    %v1271 = vsel %vm224, %v1257, %v1258
    %v1272 = vsel %vm224, %v1264, %v1257
    %v1273 = vsub.f32 %v1249, %v1272
    %v1274 = vsub.f32 %v1250, %v1271
    %v1275 = vsub.f32 %v1251, %v1270
    %v1276 = vsub.f32 %v1252, %v1269
    %v1277 = vsub.f32 %v1253, %v1268
    %v1278 = vsub.f32 %v1254, %v1267
    %v1279 = vsub.f32 %v1255, %v1266
    %v1280 = vsub.f32 %v1256, %v1265
    %v1281 = vmul.f32 %v1273, 10.185916
    %v1282 = vmul.f32 %v1274, 10.185916
    %v1283 = vmul.f32 %v1275, 10.185916
    %v1284 = vmul.f32 %v1276, 10.185916
    %v1285 = vmul.f32 %v1277, 10.185916
    %v1286 = vmul.f32 %v1278, 10.185916
    %v1287 = vmul.f32 %v1279, 10.185916
    %v1288 = vmul.f32 %v1280, 10.185916
    %vm1289 = vcmp.gt.f32.partialorder %v449, 0.0
    %vm1290 = vcmp.gt.f32.partialorder %v450, 0.0
    %vm1291 = vcmp.gt.f32.partialorder %v451, 0.0
    %vm1292 = vcmp.gt.f32.partialorder %v452, 0.0
    %vm1293 = vcmp.gt.f32.partialorder %v453, 0.0
    %vm1294 = vcmp.gt.f32.partialorder %v454, 0.0
    %vm1295 = vcmp.gt.f32.partialorder %v455, 0.0
    %vm1296 = vcmp.gt.f32.partialorder %v456, 0.0
    %v1297 = vsub.f32 %v346, %v189
    %v1298 = vsub.f32 %v348, %v190
    %v1299 = vsub.f32 %v350, %v191
    %v1300 = vsub.f32 %v352, %v192
    %v1301 = vsub.f32 %v354, %v193
    %v1302 = vsub.f32 %v356, %v194
    %v1303 = vsub.f32 %v358, %v195
    %v1304 = vsub.f32 %v360, %v196
    %v1305 = vmul.f32 %v449, 0.020371832
    %v1306 = vmul.f32 %v450, 0.020371832
    %v1307 = vmul.f32 %v451, 0.020371832
    %v1308 = vmul.f32 %v452, 0.020371832
    %v1309 = vmul.f32 %v453, 0.020371832
    %v1310 = vmul.f32 %v454, 0.020371832
    %v1311 = vmul.f32 %v455, 0.020371832
    %v1312 = vmul.f32 %v456, 0.020371832
    %v1313 = vsel %vm1289, %v189, %v346
    %v1314 = vsel %vm1290, %v190, %v348
    %v1315 = vsel %vm1291, %v191, %v350
    %v1316 = vsel %vm1292, %v192, %v352
    %v1317 = vsel %vm1293, %v193, %v354
    %v1318 = vsel %vm1294, %v194, %v356
    %v1319 = vsel %vm1295, %v195, %v358
    %v1320 = vsel %vm1296, %v196, %v360
    %v1321 = vsub.f32 1.0, %v1305
    %v1322 = vsub.f32 1.0, %v1306
    %v1323 = vsub.f32 1.0, %v1307
    %v1324 = vsub.f32 1.0, %v1308
    %v1325 = vsub.f32 1.0, %v1309
    %v1326 = vsub.f32 1.0, %v1310
    %v1327 = vsub.f32 1.0, %v1311
    %v1328 = vsub.f32 1.0, %v1312
    %v1329 = vmul.f32 %v1321, 0.5
    %v1330 = vmul.f32 %v1322, 0.5
    %v1331 = vmul.f32 %v1323, 0.5
    %v1332 = vmul.f32 %v1324, 0.5
    %v1333 = vmul.f32 %v1325, 0.5
    %v1334 = vmul.f32 %v1326, 0.5
    %v1335 = vmul.f32 %v1327, 0.5
    %v1336 = vmul.f32 %v1328, 0.5
    %v1337 = vmul.f32 %v1329, %v1297
    %v1338 = vmul.f32 %v1330, %v1298
    %v1339 = vmul.f32 %v1331, %v1299
    %v1340 = vmul.f32 %v1332, %v1300
    %v1341 = vmul.f32 %v1333, %v1301
    %v1342 = vmul.f32 %v1334, %v1302
    %v1343 = vmul.f32 %v1335, %v1303
    %v1344 = vmul.f32 %v1336, %v1304
    %v1345 = vadd.f32 %v189, %v1337
    %v1346 = vadd.f32 %v190, %v1338
    %v1347 = vadd.f32 %v191, %v1339
    %v1348 = vadd.f32 %v192, %v1340
    %v1349 = vadd.f32 %v193, %v1341
    %v1350 = vadd.f32 %v194, %v1342
    %v1351 = vadd.f32 %v195, %v1343
    %v1352 = vadd.f32 %v196, %v1344
    %v1353 = vadd.f32 %v1305, 1.0
    %v1354 = vadd.f32 %v1306, 1.0
    %v1355 = vadd.f32 %v1307, 1.0
    %v1356 = vadd.f32 %v1308, 1.0
    %v1357 = vadd.f32 %v1309, 1.0
    %v1358 = vadd.f32 %v1310, 1.0
    %v1359 = vadd.f32 %v1311, 1.0
    %v1360 = vadd.f32 %v1312, 1.0
    %v1361 = vmul.f32 %v1353, 0.5
    %v1362 = vmul.f32 %v1354, 0.5
    %v1363 = vmul.f32 %v1355, 0.5
    %v1364 = vmul.f32 %v1356, 0.5
    %v1365 = vmul.f32 %v1357, 0.5
    %v1366 = vmul.f32 %v1358, 0.5
    %v1367 = vmul.f32 %v1359, 0.5
    %v1368 = vmul.f32 %v1360, 0.5
    %v1369 = vmul.f32 %v1361, %v1297
    %v1370 = vmul.f32 %v1362, %v1298
    %v1371 = vmul.f32 %v1363, %v1299
    %v1372 = vmul.f32 %v1364, %v1300
    %v1373 = vmul.f32 %v1365, %v1301
    %v1374 = vmul.f32 %v1366, %v1302
    %v1375 = vmul.f32 %v1367, %v1303
    %v1376 = vmul.f32 %v1368, %v1304
    %v1377 = vsub.f32 %v346, %v1369
    %v1378 = vsub.f32 %v348, %v1370
    %v1379 = vsub.f32 %v350, %v1371
    %v1380 = vsub.f32 %v352, %v1372
    %v1381 = vsub.f32 %v354, %v1373
    %v1382 = vsub.f32 %v356, %v1374
    %v1383 = vsub.f32 %v358, %v1375
    %v1384 = vsub.f32 %v360, %v1376
    %v1385 = vsel %vm1289, %v1345, %v1377
    %v1386 = vsel %vm1290, %v1346, %v1378
    %v1387 = vsel %vm1291, %v1347, %v1379
    %v1388 = vsel %vm1292, %v1348, %v1380
    %v1389 = vsel %vm1293, %v1349, %v1381
    %v1390 = vsel %vm1294, %v1350, %v1382
    %v1391 = vsel %vm1295, %v1351, %v1383
    %v1392 = vsel %vm1296, %v1352, %v1384
    %v1393 = vsub.f32 %v189, %v362
    %v1394 = vsub.f32 %v190, %v364
    %v1395 = vsub.f32 %v191, %v366
    %v1396 = vsub.f32 %v192, %v368
    %v1397 = vsub.f32 %v193, %v370
    %v1398 = vsub.f32 %v194, %v372
    %v1399 = vsub.f32 %v195, %v374
    %v1400 = vsub.f32 %v196, %v376
    %v1401 = vsub.f32 %v378, %v346
    %v1402 = vsub.f32 %v380, %v348
    %v1403 = vsub.f32 %v382, %v350
    %v1404 = vsub.f32 %v384, %v352
    %v1405 = vsub.f32 %v386, %v354
    %v1406 = vsub.f32 %v388, %v356
    %v1407 = vsub.f32 %v390, %v358
    %v1408 = vsub.f32 %v392, %v360
    %v1409 = vsel %vm1289, %v1393, %v1401
    %v1410 = vsel %vm1290, %v1394, %v1402
    %v1411 = vsel %vm1291, %v1395, %v1403
    %v1412 = vsel %vm1292, %v1396, %v1404
    %v1413 = vsel %vm1293, %v1397, %v1405
    %v1414 = vsel %vm1294, %v1398, %v1406
    %v1415 = vsel %vm1295, %v1399, %v1407
    %v1416 = vsel %vm1296, %v1400, %v1408
    %v1417 = vmul.f32 %v1409, %v1297
    %v1418 = vmul.f32 %v1410, %v1298
    %v1419 = vmul.f32 %v1411, %v1299
    %v1420 = vmul.f32 %v1412, %v1300
    %v1421 = vmul.f32 %v1413, %v1301
    %v1422 = vmul.f32 %v1414, %v1302
    %v1423 = vmul.f32 %v1415, %v1303
    %v1424 = vmul.f32 %v1416, %v1304
    %vm1425 = vcmp.gt.f32.partialorder %v1417, 0.0
    %vm1426 = vcmp.gt.f32.partialorder %v1418, 0.0
    %vm1427 = vcmp.gt.f32.partialorder %v1419, 0.0
    %vm1428 = vcmp.gt.f32.partialorder %v1420, 0.0
    %vm1429 = vcmp.gt.f32.partialorder %v1421, 0.0
    %vm1430 = vcmp.gt.f32.partialorder %v1422, 0.0
    %vm1431 = vcmp.gt.f32.partialorder %v1423, 0.0
    %vm1432 = vcmp.gt.f32.partialorder %v1424, 0.0
    %v1433 = vmul.f32 %v1409, 2.0
    %v1434 = vmul.f32 %v1410, 2.0
    %v1435 = vmul.f32 %v1411, 2.0
    %v1436 = vmul.f32 %v1412, 2.0
    %v1437 = vmul.f32 %v1413, 2.0
    %v1438 = vmul.f32 %v1414, 2.0
    %v1439 = vmul.f32 %v1415, 2.0
    %v1440 = vmul.f32 %v1416, 2.0
    %v1441 = vadd.f32 %v1409, %v1297
    %v1442 = vadd.f32 %v1410, %v1298
    %v1443 = vadd.f32 %v1411, %v1299
    %v1444 = vadd.f32 %v1412, %v1300
    %v1445 = vadd.f32 %v1413, %v1301
    %v1446 = vadd.f32 %v1414, %v1302
    %v1447 = vadd.f32 %v1415, %v1303
    %v1448 = vadd.f32 %v1416, %v1304
    %v1449 = vrcp.pop %v1441
    %v1450 = vrcp.pop %v1442
    %v1451 = vrcp.pop %v1443
    %v1452 = vrcp.pop %v1444
    %v1453 = vrcp.pop %v1445
    %v1454 = vrcp.pop %v1446
    %v1455 = vrcp.pop %v1447
    %v1456 = vrcp.pop %v1448
    %v1457 = vmul.f32 %v1433, %v1449
    %v1458 = vmul.f32 %v1434, %v1450
    %v1459 = vmul.f32 %v1435, %v1451
    %v1460 = vmul.f32 %v1436, %v1452
    %v1461 = vmul.f32 %v1437, %v1453
    %v1462 = vmul.f32 %v1438, %v1454
    %v1463 = vmul.f32 %v1439, %v1455
    %v1464 = vmul.f32 %v1440, %v1456
    %v1465 = vsel %vm1425, %v1457, 0.0
    %v1466 = vsel %vm1426, %v1458, 0.0
    %v1467 = vsel %vm1427, %v1459, 0.0
    %v1468 = vsel %vm1428, %v1460, 0.0
    %v1469 = vsel %vm1429, %v1461, 0.0
    %v1470 = vsel %vm1430, %v1462, 0.0
    %v1471 = vsel %vm1431, %v1463, 0.0
    %v1472 = vsel %vm1432, %v1464, 0.0
    %v1473 = vsub.f32 %v1385, %v1313
    %v1474 = vsub.f32 %v1386, %v1314
    %v1475 = vsub.f32 %v1387, %v1315
    %v1476 = vsub.f32 %v1388, %v1316
    %v1477 = vsub.f32 %v1389, %v1317
    %v1478 = vsub.f32 %v1390, %v1318
    %v1479 = vsub.f32 %v1391, %v1319
    %v1480 = vsub.f32 %v1392, %v1320
    %v1481 = vmul.f32 %v1465, %v1473
    %v1482 = vmul.f32 %v1466, %v1474
    %v1483 = vmul.f32 %v1467, %v1475
    %v1484 = vmul.f32 %v1468, %v1476
    %v1485 = vmul.f32 %v1469, %v1477
    %v1486 = vmul.f32 %v1470, %v1478
    %v1487 = vmul.f32 %v1471, %v1479
    %v1488 = vmul.f32 %v1472, %v1480
    %v1489 = vadd.f32 %v1313, %v1481
    %v1490 = vadd.f32 %v1314, %v1482
    %v1491 = vadd.f32 %v1315, %v1483
    %v1492 = vadd.f32 %v1316, %v1484
    %v1493 = vadd.f32 %v1317, %v1485
    %v1494 = vadd.f32 %v1318, %v1486
    %v1495 = vadd.f32 %v1319, %v1487
    %v1496 = vadd.f32 %v1320, %v1488
    %v1497 = vmul.f32 %v1489, %v449
    %v1498 = vmul.f32 %v1490, %v450
    %v1499 = vmul.f32 %v1491, %v451
    %v1500 = vmul.f32 %v1492, %v452
    %v1501 = vmul.f32 %v1493, %v453
    %v1502 = vmul.f32 %v1494, %v454
    %v1503 = vmul.f32 %v1495, %v455
    %v1504 = vmul.f32 %v1496, %v456
    %1505 = vrot.lane.b32.xlu0 %v1497, 1
    %v1506 = vpop.permute.xlu0 %1505
    %1507 = vrot.lane.b32.xlu0 %v1498, 1
    %v1508 = vpop.permute.xlu0 %1507
    %1509 = vrot.lane.b32.xlu0 %v1499, 1
    %v1510 = vpop.permute.xlu0 %1509
    %1511 = vrot.lane.b32.xlu0 %v1500, 1
    %v1512 = vpop.permute.xlu0 %1511
    %1513 = vrot.lane.b32.xlu0 %v1501, 1
    %v1514 = vpop.permute.xlu0 %1513
    %1515 = vrot.lane.b32.xlu0 %v1502, 1
    %v1516 = vpop.permute.xlu0 %1515
    %1517 = vrot.lane.b32.xlu0 %v1503, 1
    %v1518 = vpop.permute.xlu0 %1517
    %1519 = vrot.lane.b32.xlu0 %v1504, 1
    %v1520 = vpop.permute.xlu0 %1519
    %v1521 = vsub.f32 %v1497, %v1506
    %v1522 = vsub.f32 %v1498, %v1508
    %v1523 = vsub.f32 %v1499, %v1510
    %v1524 = vsub.f32 %v1500, %v1512
    %v1525 = vsub.f32 %v1501, %v1514
    %v1526 = vsub.f32 %v1502, %v1516
    %v1527 = vsub.f32 %v1503, %v1518
    %v1528 = vsub.f32 %v1504, %v1520
    %v1529 = vmul.f32 %v1521, 20.371832
    %v1530 = vmul.f32 %v1522, 20.371832
    %v1531 = vmul.f32 %v1523, 20.371832
    %v1532 = vmul.f32 %v1524, 20.371832
    %v1533 = vmul.f32 %v1525, 20.371832
    %v1534 = vmul.f32 %v1526, 20.371832
    %v1535 = vmul.f32 %v1527, 20.371832
    %v1536 = vmul.f32 %v1528, 20.371832
    %v1537 = vadd.f32 %v1281, %v1529
    %v1538 = vadd.f32 %v1282, %v1530
    %v1539 = vadd.f32 %v1283, %v1531
    %v1540 = vadd.f32 %v1284, %v1532
    %v1541 = vadd.f32 %v1285, %v1533
    %v1542 = vadd.f32 %v1286, %v1534
    %v1543 = vadd.f32 %v1287, %v1535
    %v1544 = vadd.f32 %v1288, %v1536
    %v1545 = vadd.f32 %v311, %v328
    %v1546 = vadd.f32 %v310, %v327
    %v1547 = vadd.f32 %v309, %v326
    %v1548 = vadd.f32 %v308, %v325
    %v1549 = vadd.f32 %v307, %v324
    %v1550 = vadd.f32 %v306, %v323
    %v1551 = vadd.f32 %v305, %v322
    %v1552 = vadd.f32 %v312, %v321
    %v1553 = vmul.f32 %v189, 2.0
    %v1554 = vmul.f32 %v190, 2.0
    %v1555 = vmul.f32 %v191, 2.0
    %v1556 = vmul.f32 %v192, 2.0
    %v1557 = vmul.f32 %v193, 2.0
    %v1558 = vmul.f32 %v194, 2.0
    %v1559 = vmul.f32 %v195, 2.0
    %v1560 = vmul.f32 %v196, 2.0
    %v1561 = vsub.f32 %v1545, %v1553
    %v1562 = vsub.f32 %v1546, %v1554
    %v1563 = vsub.f32 %v1547, %v1555
    %v1564 = vsub.f32 %v1548, %v1556
    %v1565 = vsub.f32 %v1549, %v1557
    %v1566 = vsub.f32 %v1550, %v1558
    %v1567 = vsub.f32 %v1551, %v1559
    %v1568 = vsub.f32 %v1552, %v1560
    %v1569 = vmul.f32 %v1561, 103.75289
    %v1570 = vmul.f32 %v1562, 103.75289
    %v1571 = vmul.f32 %v1563, 103.75289
    %v1572 = vmul.f32 %v1564, 103.75289
    %v1573 = vmul.f32 %v1565, 103.75289
    %v1574 = vmul.f32 %v1566, 103.75289
    %v1575 = vmul.f32 %v1567, 103.75289
    %v1576 = vmul.f32 %v1568, 103.75289
    %v1577 = vadd.f32 %v346, %v362
    %v1578 = vadd.f32 %v348, %v364
    %v1579 = vadd.f32 %v350, %v366
    %v1580 = vadd.f32 %v352, %v368
    %v1581 = vadd.f32 %v354, %v370
    %v1582 = vadd.f32 %v356, %v372
    %v1583 = vadd.f32 %v358, %v374
    %v1584 = vadd.f32 %v360, %v376
    %v1585 = vsub.f32 %v1577, %v1553
    %v1586 = vsub.f32 %v1578, %v1554
    %v1587 = vsub.f32 %v1579, %v1555
    %v1588 = vsub.f32 %v1580, %v1556
    %v1589 = vsub.f32 %v1581, %v1557
    %v1590 = vsub.f32 %v1582, %v1558
    %v1591 = vsub.f32 %v1583, %v1559
    %v1592 = vsub.f32 %v1584, %v1560
    %v1593 = vmul.f32 %v1585, 415.01157
    %v1594 = vmul.f32 %v1586, 415.01157
    %v1595 = vmul.f32 %v1587, 415.01157
    %v1596 = vmul.f32 %v1588, 415.01157
    %v1597 = vmul.f32 %v1589, 415.01157
    %v1598 = vmul.f32 %v1590, 415.01157
    %v1599 = vmul.f32 %v1591, 415.01157
    %v1600 = vmul.f32 %v1592, 415.01157
    %v1601 = vadd.f32 %v1569, %v1593
    %v1602 = vadd.f32 %v1570, %v1594
    %v1603 = vadd.f32 %v1571, %v1595
    %v1604 = vadd.f32 %v1572, %v1596
    %v1605 = vadd.f32 %v1573, %v1597
    %v1606 = vadd.f32 %v1574, %v1598
    %v1607 = vadd.f32 %v1575, %v1599
    %v1608 = vadd.f32 %v1576, %v1600
    %v1609 = vmul.f32 %v1601, 0.001
    %v1610 = vmul.f32 %v1602, 0.001
    %v1611 = vmul.f32 %v1603, 0.001
    %v1612 = vmul.f32 %v1604, 0.001
    %v1613 = vmul.f32 %v1605, 0.001
    %v1614 = vmul.f32 %v1606, 0.001
    %v1615 = vmul.f32 %v1607, 0.001
    %v1616 = vmul.f32 %v1608, 0.001
    %v1617 = vsub.f32 %v1609, %v1537
    %v1618 = vsub.f32 %v1610, %v1538
    %v1619 = vsub.f32 %v1611, %v1539
    %v1620 = vsub.f32 %v1612, %v1540
    %v1621 = vsub.f32 %v1613, %v1541
    %v1622 = vsub.f32 %v1614, %v1542
    %v1623 = vsub.f32 %v1615, %v1543
    %v1624 = vsub.f32 %v1616, %v1544
    %v1625 = vmul.f32 %v1033, 0.001
    %v1626 = vmul.f32 %v1034, 0.001
    %v1627 = vmul.f32 %v1035, 0.001
    %v1628 = vmul.f32 %v1036, 0.001
    %v1629 = vmul.f32 %v1037, 0.001
    %v1630 = vmul.f32 %v1038, 0.001
    %v1631 = vmul.f32 %v1039, 0.001
    %v1632 = vmul.f32 %v1040, 0.001
    %v1633 = vadd.f32 %v181, %v1625
    %v1634 = vadd.f32 %v182, %v1626
    %v1635 = vadd.f32 %v183, %v1627
    %v1636 = vadd.f32 %v184, %v1628
    %v1637 = vadd.f32 %v185, %v1629
    %v1638 = vadd.f32 %v186, %v1630
    %v1639 = vadd.f32 %v187, %v1631
    %v1640 = vadd.f32 %v188, %v1632
    %v1641 = vmul.f32 %v1617, 0.001
    %v1642 = vmul.f32 %v1618, 0.001
    %v1643 = vmul.f32 %v1619, 0.001
    %v1644 = vmul.f32 %v1620, 0.001
    %v1645 = vmul.f32 %v1621, 0.001
    %v1646 = vmul.f32 %v1622, 0.001
    %v1647 = vmul.f32 %v1623, 0.001
    %v1648 = vmul.f32 %v1624, 0.001
    %v1649 = vadd.f32 %v189, %v1641
    %v1650 = vadd.f32 %v190, %v1642
    %v1651 = vadd.f32 %v191, %v1643
    %v1652 = vadd.f32 %v192, %v1644
    %v1653 = vadd.f32 %v193, %v1645
    %v1654 = vadd.f32 %v194, %v1646
    %v1655 = vadd.f32 %v195, %v1647
    %v1656 = vadd.f32 %v196, %v1648
    %v1657 = vrot.slane %v1633, 7
    %v1658 = vrot.slane %v1634, 7
    %v1659 = vrot.slane %v1635, 7
    %v1660 = vrot.slane %v1636, 7
    %v1661 = vrot.slane %v1637, 7
    %v1662 = vrot.slane %v1638, 7
    %v1663 = vrot.slane %v1639, 7
    %v1664 = vrot.slane %v1640, 7
    %v1665 = vsel %vm224, %v1663, %v1664
    %v1666 = vsel %vm224, %v1662, %v1663
    %v1667 = vsel %vm224, %v1661, %v1662
    %v1668 = vsel %vm224, %v1660, %v1661
    %v1669 = vsel %vm224, %v1659, %v1660
    %v1670 = vsel %vm224, %v1658, %v1659
    %v1671 = vsel %vm224, %v1657, %v1658
    %v1672 = vsel %vm224, %v1664, %v1657
    %v1673 = vsub.f32 %v1633, %v1672
    %v1674 = vsub.f32 %v1634, %v1671
    %v1675 = vsub.f32 %v1635, %v1670
    %v1676 = vsub.f32 %v1636, %v1669
    %v1677 = vsub.f32 %v1637, %v1668
    %v1678 = vsub.f32 %v1638, %v1667
    %v1679 = vsub.f32 %v1639, %v1666
    %v1680 = vsub.f32 %v1640, %v1665
    %v1681 = vmul.f32 %v1673, 10.185916
    %v1682 = vmul.f32 %v1674, 10.185916
    %v1683 = vmul.f32 %v1675, 10.185916
    %v1684 = vmul.f32 %v1676, 10.185916
    %v1685 = vmul.f32 %v1677, 10.185916
    %v1686 = vmul.f32 %v1678, 10.185916
    %v1687 = vmul.f32 %v1679, 10.185916
    %v1688 = vmul.f32 %v1680, 10.185916
    %1689 = vrot.lane.b32.xlu0 %v1649, 1
    %v1690 = vpop.permute.xlu0 %1689
    %1691 = vrot.lane.b32.xlu0 %v1650, 1
    %v1692 = vpop.permute.xlu0 %1691
    %1693 = vrot.lane.b32.xlu0 %v1651, 1
    %v1694 = vpop.permute.xlu0 %1693
    %1695 = vrot.lane.b32.xlu0 %v1652, 1
    %v1696 = vpop.permute.xlu0 %1695
    %1697 = vrot.lane.b32.xlu0 %v1653, 1
    %v1698 = vpop.permute.xlu0 %1697
    %1699 = vrot.lane.b32.xlu0 %v1654, 1
    %v1700 = vpop.permute.xlu0 %1699
    %1701 = vrot.lane.b32.xlu0 %v1655, 1
    %v1702 = vpop.permute.xlu0 %1701
    %1703 = vrot.lane.b32.xlu0 %v1656, 1
    %v1704 = vpop.permute.xlu0 %1703
    %v1705 = vsub.f32 %v1649, %v1690
    %v1706 = vsub.f32 %v1650, %v1692
    %v1707 = vsub.f32 %v1651, %v1694
    %v1708 = vsub.f32 %v1652, %v1696
    %v1709 = vsub.f32 %v1653, %v1698
    %v1710 = vsub.f32 %v1654, %v1700
    %v1711 = vsub.f32 %v1655, %v1702
    %v1712 = vsub.f32 %v1656, %v1704
    %v1713 = vmul.f32 %v1705, 20.371832
    %v1714 = vmul.f32 %v1706, 20.371832
    %v1715 = vmul.f32 %v1707, 20.371832
    %v1716 = vmul.f32 %v1708, 20.371832
    %v1717 = vmul.f32 %v1709, 20.371832
    %v1718 = vmul.f32 %v1710, 20.371832
    %v1719 = vmul.f32 %v1711, 20.371832
    %v1720 = vmul.f32 %v1712, 20.371832
    %v1721 = vadd.f32 %v1681, %v1713
    %v1722 = vadd.f32 %v1682, %v1714
    %v1723 = vadd.f32 %v1683, %v1715
    %v1724 = vadd.f32 %v1684, %v1716
    %v1725 = vadd.f32 %v1685, %v1717
    %v1726 = vadd.f32 %v1686, %v1718
    %v1727 = vadd.f32 %v1687, %v1719
    %v1728 = vadd.f32 %v1688, %v1720
    %vm1729 = vcmask 523264
    %v1731 = vsel %vm1729, %v125, 0
    %v1734 = vsel %vm1729, %v126, 0
    %v1737 = vsel %vm1729, %v127, 0
    %v1740 = vsel %vm1729, %v128, 0
    %v1743 = vsel %vm1729, %v129, 0
    %v1746 = vsel %vm1729, %v130, 0
    %v1749 = vsel %vm1729, %v131, 0
    %v1752 = vsel %vm1729, %v132, 0
    %1754 = vmatprep.subr.mxu0 0.0
    %1755 = vmatpush1.msra.mxu0 %v1721
    %1756 = vmatprep.subr.mxu0 0.0
    %1757 = vmatpush1.msra.mxu0 %v1722
    %1758 = vmatprep.subr.mxu0 0.0
    %1759 = vmatpush1.msra.mxu0 %v1723
    %1760 = vmatprep.subr.mxu0 0.0
    %1761 = vmatpush1.msra.mxu0 %v1724
    %1762 = vmatprep.subr.mxu0 0.0
    %1763 = vmatpush1.msra.mxu0 %v1725
    %1764 = vmatprep.subr.mxu0 0.0
    %1765 = vmatpush1.msra.mxu0 %v1726
    %1766 = vmatprep.subr.mxu0 0.0
    %1767 = vmatpush1.msra.mxu0 %v1727
    %1768 = vmatprep.subr.mxu0 0.0
    %1769 = vmatpush1.msra.mxu0 %v1728
    %1770 = vmatprep.subr.mxu0 0.0
    %1771 = vmatpush1.msra.mxu0 0.0
    %1772 = vmatprep.subr.mxu0 0.0
    %1773 = vmatpush1.msra.mxu0 0.0
    %1774 = vmatprep.subr.mxu0 0.0
    %1775 = vmatpush1.msra.mxu0 0.0
    %1776 = vmatprep.subr.mxu0 0.0
    %1777 = vmatpush1.msra.mxu0 0.0
    %1778 = vmatprep.subr.mxu0 0.0
    %1779 = vmatpush1.msra.mxu0 0.0
    %1780 = vmatprep.subr.mxu0 0.0
    %1781 = vmatpush1.msra.mxu0 0.0
    %1782 = vmatprep.subr.mxu0 0.0
    %1783 = vmatpush1.msra.mxu0 0.0
    %1784 = vmatprep.subr.mxu0 0.0
    %1785 = vmatpush1.msra.mxu0 0.0
    %1786 = vmatprep.subr.mxu0 0.0
    %1787 = vmatpush1.msra.mxu0 0.0
    %1788 = vmatprep.subr.mxu0 0.0
    %1789 = vmatpush1.msra.mxu0 0.0
    %1790 = vmatprep.subr.mxu0 0.0
    %1791 = vmatpush1.msra.mxu0 0.0
    %1792 = vmatprep.subr.mxu0 0.0
    %1793 = vmatpush1.msra.mxu0 0.0
    %1794 = vmatprep.subr.mxu0 0.0
    %1795 = vmatpush1.msra.mxu0 0.0
    %1796 = vmatprep.subr.mxu0 0.0
    %1797 = vmatpush1.msra.mxu0 0.0
    %1798 = vmatprep.subr.mxu0 0.0
    %1799 = vmatpush1.msra.mxu0 0.0
    %1800 = vmatprep.subr.mxu0 0.0
    %1801 = vmatpush1.msra.mxu0 0.0
    %1802 = vmatprep.subr.mxu0 0.0
    %1803 = vmatpush1.msra.mxu0 0.0
    %1804 = vmatprep.subr.mxu0 0.0
    %1805 = vmatpush1.msra.mxu0 0.0
    %1806 = vmatprep.subr.mxu0 0.0
    %1807 = vmatpush1.msra.mxu0 0.0
    %1808 = vmatprep.subr.mxu0 0.0
    %1809 = vmatpush1.msra.mxu0 0.0
    %1810 = vmatprep.subr.mxu0 0.0
    %1811 = vmatpush1.msra.mxu0 0.0
    %1812 = vmatprep.subr.mxu0 0.0
    %1813 = vmatpush1.msra.mxu0 0.0
    %1814 = vmatprep.subr.mxu0 0.0
    %1815 = vmatpush1.msra.mxu0 0.0
    %1816 = vmatprep.subr.mxu0 0.0
    %1817 = vmatpush1.msra.mxu0 0.0
    %1818 = vmatprep.mubr.f32.mxu0 0.0
    %1819 = vmatmul.mubr.f32.gmra.mrb[0].mxu0 %v1731
    %v1820 = vpop.f32.mrb[0].mxu0
    %v1821 = vadd.f32 0.0, %v1820
    %v1822 = vpop.f32.mrb[0].mxu0
    %1823 = vmatprep.mubr.f32.mxu0 0.0
    %1824 = vmatmul.mubr.f32.gmra.mrb[0].mxu0 %v1734
    %v1825 = vpop.f32.mrb[0].mxu0
    %v1826 = vadd.f32 0.0, %v1825
    %v1827 = vpop.f32.mrb[0].mxu0
    %1828 = vmatprep.mubr.f32.mxu0 0.0
    %1829 = vmatmul.mubr.f32.gmra.mrb[0].mxu0 %v1737
    %v1830 = vpop.f32.mrb[0].mxu0
    %v1831 = vadd.f32 0.0, %v1830
    %v1832 = vpop.f32.mrb[0].mxu0
    %1833 = vmatprep.mubr.f32.mxu0 0.0
    %1834 = vmatmul.mubr.f32.gmra.mrb[0].mxu0 %v1740
    %v1835 = vpop.f32.mrb[0].mxu0
    %v1836 = vadd.f32 0.0, %v1835
    %v1837 = vpop.f32.mrb[0].mxu0
    %1838 = vmatprep.mubr.f32.mxu0 0.0
    %1839 = vmatmul.mubr.f32.gmra.mrb[0].mxu0 %v1743
    %v1840 = vpop.f32.mrb[0].mxu0
    %v1841 = vadd.f32 0.0, %v1840
    %v1842 = vpop.f32.mrb[0].mxu0
    %1843 = vmatprep.mubr.f32.mxu0 0.0
    %1844 = vmatmul.mubr.f32.gmra.mrb[0].mxu0 %v1746
    %v1845 = vpop.f32.mrb[0].mxu0
    %v1846 = vadd.f32 0.0, %v1845
    %v1847 = vpop.f32.mrb[0].mxu0
    %1848 = vmatprep.mubr.f32.mxu0 0.0
    %1849 = vmatmul.mubr.f32.gmra.mrb[0].mxu0 %v1749
    %v1850 = vpop.f32.mrb[0].mxu0
    %v1851 = vadd.f32 0.0, %v1850
    %v1852 = vpop.f32.mrb[0].mxu0
    %1853 = vmatprep.mubr.f32.mxu0 0.0
    %1854 = vmatmul.mubr.f32.gmra.mrb[0].mxu0 %v1752
    %v1855 = vpop.f32.mrb[0].mxu0
    %v1856 = vadd.f32 0.0, %v1855
    %v1857 = vpop.f32.mrb[0].mxu0
    %1858 = vdwg.mxu0
    %1859 = vmatprep.subr.mxu0 0.0
    %1860 = vmatpush1.msra.mxu0 %v141
    %1861 = vmatprep.subr.mxu0 0.0
    %1862 = vmatpush1.msra.mxu0 %v142
    %1863 = vmatprep.subr.mxu0 0.0
    %1864 = vmatpush1.msra.mxu0 %v143
    %1865 = vmatprep.subr.mxu0 0.0
    %1866 = vmatpush1.msra.mxu0 %v144
    %1867 = vmatprep.subr.mxu0 0.0
    %1868 = vmatpush1.msra.mxu0 %v145
    %1869 = vmatprep.subr.mxu0 0.0
    %1870 = vmatpush1.msra.mxu0 %v146
    %1871 = vmatprep.subr.mxu0 0.0
    %1872 = vmatpush1.msra.mxu0 %v147
    %1873 = vmatprep.subr.mxu0 0.0
    %1874 = vmatpush1.msra.mxu0 %v148
    %1875 = vmatprep.subr.mxu0 0.0
    %1876 = vmatpush1.msra.mxu0 %v149
    %1877 = vmatprep.subr.mxu0 0.0
    %1878 = vmatpush1.msra.mxu0 %v150
    %1879 = vmatprep.subr.mxu0 0.0
    %1880 = vmatpush1.msra.mxu0 %v151
    %1881 = vmatprep.subr.mxu0 0.0
    %1882 = vmatpush1.msra.mxu0 %v152
    %1883 = vmatprep.subr.mxu0 0.0
    %1884 = vmatpush1.msra.mxu0 %v153
    %1885 = vmatprep.subr.mxu0 0.0
    %1886 = vmatpush1.msra.mxu0 %v154
    %1887 = vmatprep.subr.mxu0 0.0
    %1888 = vmatpush1.msra.mxu0 %v155
    %1889 = vmatprep.subr.mxu0 0.0
    %1890 = vmatpush1.msra.mxu0 %v156
    %1891 = vmatprep.subr.mxu0 0.0
    %1892 = vmatpush1.msra.mxu0 0.0
    %1893 = vmatprep.subr.mxu0 0.0
    %1894 = vmatpush1.msra.mxu0 0.0
    %1895 = vmatprep.subr.mxu0 0.0
    %1896 = vmatpush1.msra.mxu0 0.0
    %1897 = vmatprep.subr.mxu0 0.0
    %1898 = vmatpush1.msra.mxu0 0.0
    %1899 = vmatprep.subr.mxu0 0.0
    %1900 = vmatpush1.msra.mxu0 0.0
    %1901 = vmatprep.subr.mxu0 0.0
    %1902 = vmatpush1.msra.mxu0 0.0
    %1903 = vmatprep.subr.mxu0 0.0
    %1904 = vmatpush1.msra.mxu0 0.0
    %1905 = vmatprep.subr.mxu0 0.0
    %1906 = vmatpush1.msra.mxu0 0.0
    %1907 = vmatprep.subr.mxu0 0.0
    %1908 = vmatpush1.msra.mxu0 0.0
    %1909 = vmatprep.subr.mxu0 0.0
    %1910 = vmatpush1.msra.mxu0 0.0
    %1911 = vmatprep.subr.mxu0 0.0
    %1912 = vmatpush1.msra.mxu0 0.0
    %1913 = vmatprep.subr.mxu0 0.0
    %1914 = vmatpush1.msra.mxu0 0.0
    %1915 = vmatprep.subr.mxu0 0.0
    %1916 = vmatpush1.msra.mxu0 0.0
    %1917 = vmatprep.subr.mxu0 0.0
    %1918 = vmatpush1.msra.mxu0 0.0
    %1919 = vmatprep.subr.mxu0 0.0
    %1920 = vmatpush1.msra.mxu0 0.0
    %1921 = vmatprep.subr.mxu0 0.0
    %1922 = vmatpush1.msra.mxu0 0.0
    %1923 = vmatprep.mubr.f32.mxu0 0.0
    %1924 = vmatmul.mubr.f32.gmra.mrb[0].mxu0 %v1821
    %v1925 = vpop.f32.mrb[0].mxu0
    %v1926 = vadd.f32 0.0, %v1925
    %v1927 = vpop.f32.mrb[0].mxu0
    %1928 = vmatprep.mubr.f32.mxu0 0.0
    %1929 = vmatmul.mubr.f32.gmra.mrb[0].mxu0 %v1826
    %v1930 = vpop.f32.mrb[0].mxu0
    %v1931 = vadd.f32 0.0, %v1930
    %v1932 = vpop.f32.mrb[0].mxu0
    %1933 = vmatprep.mubr.f32.mxu0 0.0
    %1934 = vmatmul.mubr.f32.gmra.mrb[0].mxu0 %v1831
    %v1935 = vpop.f32.mrb[0].mxu0
    %v1936 = vadd.f32 0.0, %v1935
    %v1937 = vpop.f32.mrb[0].mxu0
    %1938 = vmatprep.mubr.f32.mxu0 0.0
    %1939 = vmatmul.mubr.f32.gmra.mrb[0].mxu0 %v1836
    %v1940 = vpop.f32.mrb[0].mxu0
    %v1941 = vadd.f32 0.0, %v1940
    %v1942 = vpop.f32.mrb[0].mxu0
    %1943 = vmatprep.mubr.f32.mxu0 0.0
    %1944 = vmatmul.mubr.f32.gmra.mrb[0].mxu0 %v1841
    %v1945 = vpop.f32.mrb[0].mxu0
    %v1946 = vadd.f32 0.0, %v1945
    %v1947 = vpop.f32.mrb[0].mxu0
    %1948 = vmatprep.mubr.f32.mxu0 0.0
    %1949 = vmatmul.mubr.f32.gmra.mrb[0].mxu0 %v1846
    %v1950 = vpop.f32.mrb[0].mxu0
    %v1951 = vadd.f32 0.0, %v1950
    %v1952 = vpop.f32.mrb[0].mxu0
    %1953 = vmatprep.mubr.f32.mxu0 0.0
    %1954 = vmatmul.mubr.f32.gmra.mrb[0].mxu0 %v1851
    %v1955 = vpop.f32.mrb[0].mxu0
    %v1956 = vadd.f32 0.0, %v1955
    %v1957 = vpop.f32.mrb[0].mxu0
    %1958 = vmatprep.mubr.f32.mxu0 0.0
    %1959 = vmatmul.mubr.f32.gmra.mrb[0].mxu0 %v1856
    %v1960 = vpop.f32.mrb[0].mxu0
    %v1961 = vadd.f32 0.0, %v1960
    %v1962 = vpop.f32.mrb[0].mxu0
    %1963 = vdwg.mxu0
    %v1964 = vmul.f32 %v1926, %v173
    %v1965 = vmul.f32 %v1931, %v174
    %v1966 = vmul.f32 %v1936, %v175
    %v1967 = vmul.f32 %v1941, %v176
    %v1968 = vmul.f32 %v1946, %v177
    %v1969 = vmul.f32 %v1951, %v178
    %v1970 = vmul.f32 %v1956, %v179
    %v1971 = vmul.f32 %v1961, %v180
    %v1973 = vsel %vm1729, %v133, 0
    %v1976 = vsel %vm1729, %v134, 0
    %v1979 = vsel %vm1729, %v135, 0
    %v1982 = vsel %vm1729, %v136, 0
    %v1985 = vsel %vm1729, %v137, 0
    %v1988 = vsel %vm1729, %v138, 0
    %v1991 = vsel %vm1729, %v139, 0
    %v1994 = vsel %vm1729, %v140, 0
    %1996 = vmatprep.subr.mxu0 0.0
    %1997 = vmatpush1.msra.mxu0 %v1964
    %1998 = vmatprep.subr.mxu0 0.0
    %1999 = vmatpush1.msra.mxu0 %v1965
    %2000 = vmatprep.subr.mxu0 0.0
    %2001 = vmatpush1.msra.mxu0 %v1966
    %2002 = vmatprep.subr.mxu0 0.0
    %2003 = vmatpush1.msra.mxu0 %v1967
    %2004 = vmatprep.subr.mxu0 0.0
    %2005 = vmatpush1.msra.mxu0 %v1968
    %2006 = vmatprep.subr.mxu0 0.0
    %2007 = vmatpush1.msra.mxu0 %v1969
    %2008 = vmatprep.subr.mxu0 0.0
    %2009 = vmatpush1.msra.mxu0 %v1970
    %2010 = vmatprep.subr.mxu0 0.0
    %2011 = vmatpush1.msra.mxu0 %v1971
    %2012 = vmatprep.subr.mxu0 0.0
    %2013 = vmatpush1.msra.mxu0 0.0
    %2014 = vmatprep.subr.mxu0 0.0
    %2015 = vmatpush1.msra.mxu0 0.0
    %2016 = vmatprep.subr.mxu0 0.0
    %2017 = vmatpush1.msra.mxu0 0.0
    %2018 = vmatprep.subr.mxu0 0.0
    %2019 = vmatpush1.msra.mxu0 0.0
    %2020 = vmatprep.subr.mxu0 0.0
    %2021 = vmatpush1.msra.mxu0 0.0
    %2022 = vmatprep.subr.mxu0 0.0
    %2023 = vmatpush1.msra.mxu0 0.0
    %2024 = vmatprep.subr.mxu0 0.0
    %2025 = vmatpush1.msra.mxu0 0.0
    %2026 = vmatprep.subr.mxu0 0.0
    %2027 = vmatpush1.msra.mxu0 0.0
    %2028 = vmatprep.subr.mxu0 0.0
    %2029 = vmatpush1.msra.mxu0 0.0
    %2030 = vmatprep.subr.mxu0 0.0
    %2031 = vmatpush1.msra.mxu0 0.0
    %2032 = vmatprep.subr.mxu0 0.0
    %2033 = vmatpush1.msra.mxu0 0.0
    %2034 = vmatprep.subr.mxu0 0.0
    %2035 = vmatpush1.msra.mxu0 0.0
    %2036 = vmatprep.subr.mxu0 0.0
    %2037 = vmatpush1.msra.mxu0 0.0
    %2038 = vmatprep.subr.mxu0 0.0
    %2039 = vmatpush1.msra.mxu0 0.0
    %2040 = vmatprep.subr.mxu0 0.0
    %2041 = vmatpush1.msra.mxu0 0.0
    %2042 = vmatprep.subr.mxu0 0.0
    %2043 = vmatpush1.msra.mxu0 0.0
    %2044 = vmatprep.subr.mxu0 0.0
    %2045 = vmatpush1.msra.mxu0 0.0
    %2046 = vmatprep.subr.mxu0 0.0
    %2047 = vmatpush1.msra.mxu0 0.0
    %2048 = vmatprep.subr.mxu0 0.0
    %2049 = vmatpush1.msra.mxu0 0.0
    %2050 = vmatprep.subr.mxu0 0.0
    %2051 = vmatpush1.msra.mxu0 0.0
    %2052 = vmatprep.subr.mxu0 0.0
    %2053 = vmatpush1.msra.mxu0 0.0
    %2054 = vmatprep.subr.mxu0 0.0
    %2055 = vmatpush1.msra.mxu0 0.0
    %2056 = vmatprep.subr.mxu0 0.0
    %2057 = vmatpush1.msra.mxu0 0.0
    %2058 = vmatprep.subr.mxu0 0.0
    %2059 = vmatpush1.msra.mxu0 0.0
    %2060 = vmatprep.mubr.f32.mxu0 0.0
    %2061 = vmatmul.mubr.f32.gmra.mrb[0].mxu0 %v1973
    %v2062 = vpop.f32.mrb[0].mxu0
    %v2063 = vadd.f32 0.0, %v2062
    %v2064 = vpop.f32.mrb[0].mxu0
    %2065 = vmatprep.mubr.f32.mxu0 0.0
    %2066 = vmatmul.mubr.f32.gmra.mrb[0].mxu0 %v1976
    %v2067 = vpop.f32.mrb[0].mxu0
    %v2068 = vadd.f32 0.0, %v2067
    %v2069 = vpop.f32.mrb[0].mxu0
    %2070 = vmatprep.mubr.f32.mxu0 0.0
    %2071 = vmatmul.mubr.f32.gmra.mrb[0].mxu0 %v1979
    %v2072 = vpop.f32.mrb[0].mxu0
    %v2073 = vadd.f32 0.0, %v2072
    %v2074 = vpop.f32.mrb[0].mxu0
    %2075 = vmatprep.mubr.f32.mxu0 0.0
    %2076 = vmatmul.mubr.f32.gmra.mrb[0].mxu0 %v1982
    %v2077 = vpop.f32.mrb[0].mxu0
    %v2078 = vadd.f32 0.0, %v2077
    %v2079 = vpop.f32.mrb[0].mxu0
    %2080 = vmatprep.mubr.f32.mxu0 0.0
    %2081 = vmatmul.mubr.f32.gmra.mrb[0].mxu0 %v1985
    %v2082 = vpop.f32.mrb[0].mxu0
    %v2083 = vadd.f32 0.0, %v2082
    %v2084 = vpop.f32.mrb[0].mxu0
    %2085 = vmatprep.mubr.f32.mxu0 0.0
    %2086 = vmatmul.mubr.f32.gmra.mrb[0].mxu0 %v1988
    %v2087 = vpop.f32.mrb[0].mxu0
    %v2088 = vadd.f32 0.0, %v2087
    %v2089 = vpop.f32.mrb[0].mxu0
    %2090 = vmatprep.mubr.f32.mxu0 0.0
    %2091 = vmatmul.mubr.f32.gmra.mrb[0].mxu0 %v1991
    %v2092 = vpop.f32.mrb[0].mxu0
    %v2093 = vadd.f32 0.0, %v2092
    %v2094 = vpop.f32.mrb[0].mxu0
    %2095 = vmatprep.mubr.f32.mxu0 0.0
    %2096 = vmatmul.mubr.f32.gmra.mrb[0].mxu0 %v1994
    %v2097 = vpop.f32.mrb[0].mxu0
    %v2098 = vadd.f32 0.0, %v2097
    %v2099 = vpop.f32.mrb[0].mxu0
    %2100 = vdwg.mxu0
    %2101 = vmatprep.subr.mxu0 0.0
    %2102 = vmatpush1.msra.mxu0 %v157
    %2103 = vmatprep.subr.mxu0 0.0
    %2104 = vmatpush1.msra.mxu0 %v158
    %2105 = vmatprep.subr.mxu0 0.0
    %2106 = vmatpush1.msra.mxu0 %v159
    %2107 = vmatprep.subr.mxu0 0.0
    %2108 = vmatpush1.msra.mxu0 %v160
    %2109 = vmatprep.subr.mxu0 0.0
    %2110 = vmatpush1.msra.mxu0 %v161
    %2111 = vmatprep.subr.mxu0 0.0
    %2112 = vmatpush1.msra.mxu0 %v162
    %2113 = vmatprep.subr.mxu0 0.0
    %2114 = vmatpush1.msra.mxu0 %v163
    %2115 = vmatprep.subr.mxu0 0.0
    %2116 = vmatpush1.msra.mxu0 %v164
    %2117 = vmatprep.subr.mxu0 0.0
    %2118 = vmatpush1.msra.mxu0 %v165
    %2119 = vmatprep.subr.mxu0 0.0
    %2120 = vmatpush1.msra.mxu0 %v166
    %2121 = vmatprep.subr.mxu0 0.0
    %2122 = vmatpush1.msra.mxu0 %v167
    %2123 = vmatprep.subr.mxu0 0.0
    %2124 = vmatpush1.msra.mxu0 %v168
    %2125 = vmatprep.subr.mxu0 0.0
    %2126 = vmatpush1.msra.mxu0 %v169
    %2127 = vmatprep.subr.mxu0 0.0
    %2128 = vmatpush1.msra.mxu0 %v170
    %2129 = vmatprep.subr.mxu0 0.0
    %2130 = vmatpush1.msra.mxu0 %v171
    %2131 = vmatprep.subr.mxu0 0.0
    %2132 = vmatpush1.msra.mxu0 %v172
    %2133 = vmatprep.subr.mxu0 0.0
    %2134 = vmatpush1.msra.mxu0 0.0
    %2135 = vmatprep.subr.mxu0 0.0
    %2136 = vmatpush1.msra.mxu0 0.0
    %2137 = vmatprep.subr.mxu0 0.0
    %2138 = vmatpush1.msra.mxu0 0.0
    %2139 = vmatprep.subr.mxu0 0.0
    %2140 = vmatpush1.msra.mxu0 0.0
    %2141 = vmatprep.subr.mxu0 0.0
    %2142 = vmatpush1.msra.mxu0 0.0
    %2143 = vmatprep.subr.mxu0 0.0
    %2144 = vmatpush1.msra.mxu0 0.0
    %2145 = vmatprep.subr.mxu0 0.0
    %2146 = vmatpush1.msra.mxu0 0.0
    %2147 = vmatprep.subr.mxu0 0.0
    %2148 = vmatpush1.msra.mxu0 0.0
    %2149 = vmatprep.subr.mxu0 0.0
    %2150 = vmatpush1.msra.mxu0 0.0
    %2151 = vmatprep.subr.mxu0 0.0
    %2152 = vmatpush1.msra.mxu0 0.0
    %2153 = vmatprep.subr.mxu0 0.0
    %2154 = vmatpush1.msra.mxu0 0.0
    %2155 = vmatprep.subr.mxu0 0.0
    %2156 = vmatpush1.msra.mxu0 0.0
    %2157 = vmatprep.subr.mxu0 0.0
    %2158 = vmatpush1.msra.mxu0 0.0
    %2159 = vmatprep.subr.mxu0 0.0
    %2160 = vmatpush1.msra.mxu0 0.0
    %2161 = vmatprep.subr.mxu0 0.0
    %2162 = vmatpush1.msra.mxu0 0.0
    %2163 = vmatprep.subr.mxu0 0.0
    %2164 = vmatpush1.msra.mxu0 0.0
    %2165 = vmatprep.mubr.f32.mxu0 0.0
    %2166 = vmatmul.mubr.f32.gmra.mrb[0].mxu0 %v2063
    %v2167 = vpop.f32.mrb[0].mxu0
    %v2168 = vadd.f32 0.0, %v2167
    %v2169 = vpop.f32.mrb[0].mxu0
    %2170 = vmatprep.mubr.f32.mxu0 0.0
    %2171 = vmatmul.mubr.f32.gmra.mrb[0].mxu0 %v2068
    %v2172 = vpop.f32.mrb[0].mxu0
    %v2173 = vadd.f32 0.0, %v2172
    %v2174 = vpop.f32.mrb[0].mxu0
    %2175 = vmatprep.mubr.f32.mxu0 0.0
    %2176 = vmatmul.mubr.f32.gmra.mrb[0].mxu0 %v2073
    %v2177 = vpop.f32.mrb[0].mxu0
    %v2178 = vadd.f32 0.0, %v2177
    %v2179 = vpop.f32.mrb[0].mxu0
    %2180 = vmatprep.mubr.f32.mxu0 0.0
    %2181 = vmatmul.mubr.f32.gmra.mrb[0].mxu0 %v2078
    %v2182 = vpop.f32.mrb[0].mxu0
    %v2183 = vadd.f32 0.0, %v2182
    %v2184 = vpop.f32.mrb[0].mxu0
    %2185 = vmatprep.mubr.f32.mxu0 0.0
    %2186 = vmatmul.mubr.f32.gmra.mrb[0].mxu0 %v2083
    %v2187 = vpop.f32.mrb[0].mxu0
    %v2188 = vadd.f32 0.0, %v2187
    %v2189 = vpop.f32.mrb[0].mxu0
    %2190 = vmatprep.mubr.f32.mxu0 0.0
    %2191 = vmatmul.mubr.f32.gmra.mrb[0].mxu0 %v2088
    %v2192 = vpop.f32.mrb[0].mxu0
    %v2193 = vadd.f32 0.0, %v2192
    %v2194 = vpop.f32.mrb[0].mxu0
    %2195 = vmatprep.mubr.f32.mxu0 0.0
    %2196 = vmatmul.mubr.f32.gmra.mrb[0].mxu0 %v2093
    %v2197 = vpop.f32.mrb[0].mxu0
    %v2198 = vadd.f32 0.0, %v2197
    %v2199 = vpop.f32.mrb[0].mxu0
    %2200 = vmatprep.mubr.f32.mxu0 0.0
    %2201 = vmatmul.mubr.f32.gmra.mrb[0].mxu0 %v2098
    %v2202 = vpop.f32.mrb[0].mxu0
    %v2203 = vadd.f32 0.0, %v2202
    %v2204 = vpop.f32.mrb[0].mxu0
    %2205 = vdwg.mxu0
    %v2206 = vrot.slane %v2168, 1
    %v2207 = vrot.slane %v2173, 1
    %v2208 = vrot.slane %v2178, 1
    %v2209 = vrot.slane %v2183, 1
    %v2210 = vrot.slane %v2188, 1
    %v2211 = vrot.slane %v2193, 1
    %v2212 = vrot.slane %v2198, 1
    %v2213 = vrot.slane %v2203, 1
    %v2214 = vsel %vm207, %v2212, %v2213
    %v2215 = vsel %vm207, %v2211, %v2212
    %v2216 = vsel %vm207, %v2210, %v2211
    %v2217 = vsel %vm207, %v2209, %v2210
    %v2218 = vsel %vm207, %v2208, %v2209
    %v2219 = vsel %vm207, %v2207, %v2208
    %v2220 = vsel %vm207, %v2206, %v2207
    %v2221 = vsel %vm207, %v2213, %v2206
    %v2222 = vsub.f32 %v2220, %v2168
    %v2223 = vsub.f32 %v2219, %v2173
    %v2224 = vsub.f32 %v2218, %v2178
    %v2225 = vsub.f32 %v2217, %v2183
    %v2226 = vsub.f32 %v2216, %v2188
    %v2227 = vsub.f32 %v2215, %v2193
    %v2228 = vsub.f32 %v2214, %v2198
    %v2229 = vsub.f32 %v2221, %v2203
    %v2230 = vmul.f32 %v2222, 10.185916
    %v2231 = vmul.f32 %v2223, 10.185916
    %v2232 = vmul.f32 %v2224, 10.185916
    %v2233 = vmul.f32 %v2225, 10.185916
    %v2234 = vmul.f32 %v2226, 10.185916
    %v2235 = vmul.f32 %v2227, 10.185916
    %v2236 = vmul.f32 %v2228, 10.185916
    %v2237 = vmul.f32 %v2229, 10.185916
    %v2238 = vsub.f32 %v1633, %v2230
    %v2239 = vsub.f32 %v1634, %v2231
    %v2240 = vsub.f32 %v1635, %v2232
    %v2241 = vsub.f32 %v1636, %v2233
    %v2242 = vsub.f32 %v1637, %v2234
    %v2243 = vsub.f32 %v1638, %v2235
    %v2244 = vsub.f32 %v1639, %v2236
    %v2245 = vsub.f32 %v1640, %v2237
    %2246 = vrot.lane.b32.xlu0 %v2168, 127
    %v2247 = vpop.permute.xlu0 %2246
    %2248 = vrot.lane.b32.xlu0 %v2173, 127
    %v2249 = vpop.permute.xlu0 %2248
    %2250 = vrot.lane.b32.xlu0 %v2178, 127
    %v2251 = vpop.permute.xlu0 %2250
    %2252 = vrot.lane.b32.xlu0 %v2183, 127
    %v2253 = vpop.permute.xlu0 %2252
    %2254 = vrot.lane.b32.xlu0 %v2188, 127
    %v2255 = vpop.permute.xlu0 %2254
    %2256 = vrot.lane.b32.xlu0 %v2193, 127
    %v2257 = vpop.permute.xlu0 %2256
    %2258 = vrot.lane.b32.xlu0 %v2198, 127
    %v2259 = vpop.permute.xlu0 %2258
    %2260 = vrot.lane.b32.xlu0 %v2203, 127
    %v2261 = vpop.permute.xlu0 %2260
    %v2262 = vsub.f32 %v2247, %v2168
    %v2263 = vsub.f32 %v2249, %v2173
    %v2264 = vsub.f32 %v2251, %v2178
    %v2265 = vsub.f32 %v2253, %v2183
    %v2266 = vsub.f32 %v2255, %v2188
    %v2267 = vsub.f32 %v2257, %v2193
    %v2268 = vsub.f32 %v2259, %v2198
    %v2269 = vsub.f32 %v2261, %v2203
    %v2270 = vmul.f32 %v2262, 20.371832
    %v2271 = vmul.f32 %v2263, 20.371832
    %v2272 = vmul.f32 %v2264, 20.371832
    %v2273 = vmul.f32 %v2265, 20.371832
    %v2274 = vmul.f32 %v2266, 20.371832
    %v2275 = vmul.f32 %v2267, 20.371832
    %v2276 = vmul.f32 %v2268, 20.371832
    %v2277 = vmul.f32 %v2269, 20.371832
    %v2278 = vsub.f32 %v1649, %v2270
    %v2279 = vsub.f32 %v1650, %v2271
    %v2280 = vsub.f32 %v1651, %v2272
    %v2281 = vsub.f32 %v1652, %v2273
    %v2282 = vsub.f32 %v1653, %v2274
    %v2283 = vsub.f32 %v1654, %v2275
    %v2284 = vsub.f32 %v1655, %v2276
    %v2285 = vsub.f32 %v1656, %v2277
    %2286 = vst [vmem:[#allocation14] sm:$0xff] %v2238
    %2287 = vst [vmem:[#allocation14 + $0x8] sm:$0xff] %v2239
    %2288 = vst [vmem:[#allocation14 + $0x10] sm:$0xff] %v2240
    %2289 = vst [vmem:[#allocation14 + $0x18] sm:$0xff] %v2241
    %2290 = vst [vmem:[#allocation14 + $0x20] sm:$0xff] %v2242
    %2291 = vst [vmem:[#allocation14 + $0x28] sm:$0xff] %v2243
    %2292 = vst [vmem:[#allocation14 + $0x30] sm:$0xff] %v2244
    %2293 = vst [vmem:[#allocation14 + $0x38] sm:$0xff] %v2245
    %2294 = vst [vmem:[#allocation15] sm:$0xff] %v2278
    %2295 = vst [vmem:[#allocation15 + $0x8] sm:$0xff] %v2279
    %2296 = vst [vmem:[#allocation15 + $0x10] sm:$0xff] %v2280
    %2297 = vst [vmem:[#allocation15 + $0x18] sm:$0xff] %v2281
    %2298 = vst [vmem:[#allocation15 + $0x20] sm:$0xff] %v2282
    %2299 = vst [vmem:[#allocation15 + $0x28] sm:$0xff] %v2283
    %2300 = vst [vmem:[#allocation15 + $0x30] sm:$0xff] %v2284
    %2301 = vst [vmem:[#allocation15 + $0x38] sm:$0xff] %v2285
    // Predicated region
    $region58: #{tpu_custom_call.1} parent=1 // pred_check
      _
    $region59: #{tpu_custom_call.1} parent=1 // pred_check_branch
      %2303 = sbr.rel (0) target = $region61
    $region60: #{tpu_custom_call.1} parent=1 // pred_region
      %s2305 = ssub.s32 1024, 1024
      %2306 = vsyncadd [#allocation4], %s2305
      %s2307 = sshll.u32 [#allocation14], 4
      %s2308 = int_to_ptr.vmem [resolvable:$true] %s2307
      %2313 = dma.vmem_to_hbm [thread:$0]  %s2308, 1024, %s7, [#allocation4], 128, 128, 8
    $region61: #{tpu_custom_call.1} parent=1 // pred_fallthru
      _
    // Predicated region
    $region62: #{tpu_custom_call.1} parent=1 // pred_check
      _
    $region63: #{tpu_custom_call.1} parent=1 // pred_check_branch
      %2315 = sbr.rel (0) target = $region65
    $region64: #{tpu_custom_call.1} parent=1 // pred_region
      %s2317 = ssub.s32 1024, 1024
      %2318 = vsyncadd [#allocation16], %s2317
      %s2319 = sshll.u32 [#allocation15], 4
      %s2320 = int_to_ptr.vmem [resolvable:$true] %s2319
      %2325 = dma.vmem_to_hbm [thread:$0]  %s2320, 1024, %s8, [#allocation16], 128, 128, 8
    $region65: #{tpu_custom_call.1} parent=1 // pred_fallthru
      _
    // Predicated region
    $region66: #{tpu_custom_call.1} parent=1 // pred_check
      _
    $region67: #{tpu_custom_call.1} parent=1 // pred_check_branch
      %2327 = sbr.rel (0) target = $region69
    $region68: #{tpu_custom_call.1} parent=1 // pred_region
      %2328 = dma.done [#allocation4], 1024
    $region69: #{tpu_custom_call.1} parent=1 // pred_fallthru
      _
    // Predicated region
    $region70: #{tpu_custom_call.1} parent=1 // pred_check
      _
    $region71: #{tpu_custom_call.1} parent=1 // pred_check_branch
      %2330 = sbr.rel (0) target = $region73
    $region72: #{tpu_custom_call.1} parent=1 // pred_region
      %2331 = dma.done [#allocation16], 1024
    $region73: #{tpu_custom_call.1} parent=1 // pred_fallthru
      _
    %2332 = vsyncpa [#allocation3], 1
    %2333 = vsyncpa [#allocation6], 1
    %2334 = vsyncpa [#allocation9], 1
    %2335 = vsyncpa [#allocation12], 1
    %2336 = vsyncpa [#allocation4], 1
    %2337 = vsyncpa [#allocation16], 1

</llo_original>
